<compile_context>
chip_gen: v7x
topology: tpu7x:2x2x1
jax: 0.10.0
libtpu: 0.0.40
codegen_flags: <defaults>
</compile_context>

<pallas_src>
import jax
import jax.numpy as jnp
from jax.experimental import pallas as pl
from jax.experimental.pallas import tpu as pltpu

LANE = 128
SUBLANE = 16  # bf16-friendly sublane multiple


def _round_up(n, m):
    return -(-n // m) * m


def _pad_axis(a, axis, mult):
    amt = (-a.shape[axis]) % mult
    if amt == 0:
        return a
    widths = [(0, 0)] * a.ndim
    widths[axis] = (0, amt)
    return jnp.pad(a, widths)


def _vmem_capacity_bytes():
    """Physical per-core VMEM; conservative fallback (v7x) if unavailable."""
    try:
        info = pltpu.get_tpu_info()
        cap = getattr(info, "vmem_capacity_bytes", None)
        if cap:
            return int(cap)
    except Exception:
        pass
    return 64 << 20


def _make_kernel(seq_len, seq_pad, num_layers, K, Hp):
    pad = K // 2

    def kernel(x_ref, w_in_ref, b_in_ref, wc_ref, shift_ref, w_out_ref,
               b_out_ref, o_ref):
        tile_m = x_ref.shape[0]
        g = tile_m // seq_pad  # whole sequences per tile (static)

        # Input projection: [tile_m, Dp] @ [Dp, Hp] on the MXU (bf16 in, f32 acc).
        h = jnp.dot(x_ref[...], w_in_ref[...],
                    preferred_element_type=jnp.float32) + b_in_ref[...]

        # Hoisted per-tap boundary masks at full (tile_m, Hp) width, f32 0/1,
        # computed ONCE per grid step and reused by every layer (multiply, not
        # select -> no per-layer re-broadcast).  pos is built from a 3-D iota
        # (no integer mod) because tiles are whole padded sequences.
        pos = jax.lax.broadcasted_iota(
            jnp.int32, (g, seq_pad, Hp), 1).reshape(tile_m, Hp)
        masks = {}
        for k in range(K):
            sh = pad - k
            if sh == 0:
                continue
            m = (pos >= max(sh, 0)) & (pos < seq_len + min(sh, 0))
            masks[k] = m.astype(jnp.float32)

        for l in range(num_layers):
            h_b = h.astype(jnp.bfloat16)
            # One fused [tile_m, Hp] @ [Hp, K*Hp] matmul per layer.
            y_all = jnp.dot(h_b, wc_ref[l],
                            preferred_element_type=jnp.float32)
            # Center tap: no roll / mask needed.
            y = y_all[:, pad * Hp:(pad + 1) * Hp]
            for k in range(K):
                if k == pad:
                    continue
                p = y_all[:, k * Hp:(k + 1) * Hp]       # 128-lane-aligned slice
                p = pltpu.roll(p, shift=(pad - k) % tile_m, axis=0)  # XLU
                y = y + p * masks[k]
            # BatchNorm(eval) + conv bias already folded into wc / shift.
            y = jnp.maximum(y + shift_ref[l], 0.0)       # ReLU
            h = h + y                                    # residual

        z = jnp.dot(h.astype(jnp.bfloat16), w_out_ref[...],
                    preferred_element_type=jnp.float32) + b_out_ref[...]
        # Kept f32 output for accuracy; could store bf16 to halve HBM
        # writeback on v5e if the padded-latent writeback ever shows up.
        o_ref[...] = z.astype(o_ref.dtype)

    return kernel


def encoder_forward(x, params, *, tile_rows=None):
    """x: [B, S, input_dim] f32 -> [B, S, latent_dim] f32 (eval mode)."""
    (w_in, b_in, wc, bc, gamma, beta, rmean, rvar, w_out, b_out) = params
    B, S, D_in = x.shape
    H = w_in.shape[1]
    L = w_out.shape[1]
    num_layers, K = wc.shape[0], wc.shape[1]
    eps = 1e-5

    # ---- Fold BatchNorm(eval) + conv bias into weights (wrapper-time). -----
    scale = gamma / jnp.sqrt(rvar + eps)                 # [nl, H]
    shift = beta - rmean * scale                         # [nl, H]
    wc_f = wc * scale[:, None, None, :]                  # scale out-channel
    shift_f = bc * scale + shift                         # [nl, H]

    # ---- Lane / sublane padding. -------------------------------------------
    Sp = _round_up(S, SUBLANE)
    Dp = _round_up(D_in, LANE)
    Hp = _round_up(H, LANE)
    Lp = _round_up(L, LANE)

    w_in_p = _pad_axis(_pad_axis(w_in, 0, LANE), 1, LANE).astype(jnp.bfloat16)
    b_in_p = _pad_axis(b_in, 0, LANE).reshape(1, Hp).astype(jnp.float32)
    # Fused conv weights: [nl, K, Hp, Hp] -> [nl, Hp, K*Hp] so one matmul per
    # layer produces all K taps; tap k is the lane slice [k*Hp, (k+1)*Hp).
    wc_pad = _pad_axis(_pad_axis(wc_f, 2, LANE), 3, LANE)
    wc_fused = jnp.transpose(wc_pad, (0, 2, 1, 3)).reshape(
        num_layers, Hp, K * Hp).astype(jnp.bfloat16)
    shift_p = _pad_axis(shift_f, 1, LANE).reshape(num_layers, 1, Hp)
    shift_p = shift_p.astype(jnp.float32)
    w_out_p = _pad_axis(_pad_axis(w_out, 0, LANE), 1, LANE).astype(jnp.bfloat16)
    b_out_p = _pad_axis(b_out, 0, LANE).reshape(1, Lp).astype(jnp.float32)

    weights = (w_in_p, b_in_p, wc_fused, shift_p, w_out_p, b_out_p)
    weight_bytes = int(sum(a.size * a.dtype.itemsize for a in weights))

    # ---- Per-generation VMEM budget and M-tile sizing. ----------------------
    vmem_cap = _vmem_capacity_bytes()
    budget = (vmem_cap * 3) // 4          # ~48 MiB on v7x, ~96 MiB on v5e/v6e
    # Per-row cost: double-buffered x/out tiles + live f32/bf16 temps
    # (h, h_b, y_all, y, rolled tap, masks, z) with a 1.5x safety factor for
    # compiler scratch / spill headroom.
    per_row = (2 * Dp * 2 + 2 * Lp * 4
               + int(1.5 * (Hp * (10 + 8 * K) + Lp * 4)))
    if tile_rows is None:
        rows_fit = max(Sp, (budget - weight_bytes - (4 << 20)) // per_row)
    else:
        rows_fit = max(Sp, int(tile_rows))
    g = max(1, min(rows_fit // Sp, B))     # whole sequences per grid step
    tile_M = g * Sp
    num_tiles = -(-B // g)
    Bp = num_tiles * g
    Mp = Bp * Sp
    vmem_limit = int(budget)

    # ---- Pad input: [B,S,D] -> [Bp,Sp,Dp] -> [Mp, Dp] bf16 (sequence-aligned
    # tiles: no conv halo exchange, the in-kernel masks handle all edges). ----
    x_p = jnp.pad(x, ((0, Bp - B), (0, Sp - S), (0, Dp - D_in)))
    x_p = x_p.astype(jnp.bfloat16).reshape(Mp, Dp)

    kernel = _make_kernel(S, Sp, num_layers, K, Hp)

    def _call(single_buffer_weights):
        def wspec(a):
            nd = a.ndim
            idx = lambda i, nd=nd: (0,) * nd
            if single_buffer_weights:
                # Constant index_map -> no benefit from double buffering.
                return pl.BlockSpec(a.shape, idx, pipeline_mode=pl.Buffered(1))
            return pl.BlockSpec(a.shape, idx)

        in_specs = ([pl.BlockSpec((tile_M, Dp), lambda i: (i, 0))]
                    + [wspec(a) for a in weights])
        return pl.pallas_call(
            kernel,
            out_shape=jax.ShapeDtypeStruct((Mp, Lp), jnp.float32),
            grid_spec=pltpu.PrefetchScalarGridSpec(
                num_scalar_prefetch=0,
                grid=(num_tiles,),
                in_specs=in_specs,
                out_specs=pl.BlockSpec((tile_M, Lp), lambda i: (i, 0)),
            ),
            compiler_params=pltpu.CompilerParams(
                dimension_semantics=("parallel",),
                vmem_limit_bytes=vmem_limit),
        )(x_p, *weights)

    try:
        out = _call(True)
    except Exception:
        # Fallback if single-buffered (Buffered(1)) weight specs are not
        # supported by this jax version: accept default double buffering.
        out = _call(False)

    return out.reshape(Bp, Sp, Lp)[:B, :S, :L].astype(jnp.float32)


def init_params(key, input_dim, hidden_dim, latent_dim, kernel_size,
                num_layers):
    """Raw (unfolded) parameters mirroring the PyTorch module (eval mode).

    Conv weights are stored as [num_layers, K, H_in, H_out] (PyTorch Conv1d
    weight [out, in, K] pre-transposed so the kernel does h_shift @ W[k])."""
    ks = jax.random.split(key, 10)
    w_in = jax.random.normal(ks[0], (input_dim, hidden_dim), jnp.float32) * 0.1
    b_in = jax.random.normal(ks[1], (hidden_dim,), jnp.float32) * 0.01
    wc = jax.random.normal(
        ks[2], (num_layers, kernel_size, hidden_dim, hidden_dim),
        jnp.float32) * 0.05
    bc = jax.random.normal(ks[3], (num_layers, hidden_dim), jnp.float32) * 0.01
    gamma = 1.0 + 0.1 * jax.random.normal(ks[4], (num_layers, hidden_dim),
                                          jnp.float32)
    beta = 0.1 * jax.random.normal(ks[5], (num_layers, hidden_dim),
                                   jnp.float32)
    rmean = 0.1 * jax.random.normal(ks[6], (num_layers, hidden_dim),
                                    jnp.float32)
    rvar = 1.0 + 0.1 * jnp.abs(
        jax.random.normal(ks[7], (num_layers, hidden_dim), jnp.float32))
    w_out = jax.random.normal(ks[8], (hidden_dim, latent_dim),
                              jnp.float32) * 0.1
    b_out = jax.random.normal(ks[9], (latent_dim,), jnp.float32) * 0.01
    return (w_in, b_in, wc, bc, gamma, beta, rmean, rvar, w_out, b_out)


def encoder_reference(x, params):
    """Pure-JAX f32 reference mirroring the PyTorch forward (eval mode)."""
    (w_in, b_in, wc, bc, gamma, beta, rmean, rvar, w_out, b_out) = params
    eps = 1e-5
    scale = gamma / jnp.sqrt(rvar + eps)
    shift = beta - rmean * scale
    num_layers, K = wc.shape[0], wc.shape[1]
    pad = K // 2
    S = x.shape[1]
    h = jnp.einsum("bsd,dh->bsh", x, w_in) + b_in
    for l in range(num_layers):
        hp = jnp.pad(h, ((0, 0), (pad, pad), (0, 0)))
        y = sum(jnp.einsum("bsh,hj->bsj", hp[:, k:k + S, :], wc[l, k])
                for k in range(K))
        y = (y + bc[l]) * scale[l] + shift[l]
        y = jnp.maximum(y, 0.0)
        h = h + y
    return jnp.einsum("bsh,hl->bsl", h, w_out) + b_out


if __name__ == "__main__":
    key = jax.random.PRNGKey(0)

    configs = [
        # (B, S, input_dim, hidden, latent, K, num_layers, tile_rows)
        (2, 16, 8, 32, 16, 3, 3, None),   # auto tile sizing (single tile)
        (5, 12, 8, 32, 16, 3, 3, 32),     # forced multi-tile grid + seq/batch padding
        (3, 10, 6, 48, 20, 5, 2, 16),     # wider conv, one sequence per tile
    ]

    for idx, (B, S, D, H, L, K, NL, TR) in enumerate(configs):
        kx, kp, key = jax.random.split(key, 3)
        x = jax.random.normal(kx, (B, S, D), jnp.float32)
        params = init_params(kp, D, H, L, K, NL)

        z = jax.block_until_ready(encoder_forward(x, params, tile_rows=TR))
        z_ref = encoder_reference(x, params)

        assert z.shape == (B, S, L), f"config {idx}: bad shape {z.shape}"
        max_err = float(jnp.max(jnp.abs(z - z_ref)))
        assert jnp.allclose(z, z_ref, atol=2e-2, rtol=2e-2), (
            f"config {idx}: mismatch vs reference (max abs err {max_err})")

    print("KERNEL_OK")
</pallas_src>

<mosaic_0001>
module attributes {stable_mosaic.version = 11 : i64} {
  func.func @kernel(%arg0: i32, %arg1: memref<32x128xbf16, #tpu.memory_space<vmem>>, %arg2: memref<128x128xbf16, #tpu.memory_space<vmem>>, %arg3: memref<1x128xf32, #tpu.memory_space<vmem>>, %arg4: memref<3x128x384xbf16, #tpu.memory_space<vmem>>, %arg5: memref<3x1x128xf32, #tpu.memory_space<vmem>>, %arg6: memref<128x128xbf16, #tpu.memory_space<vmem>>, %arg7: memref<1x128xf32, #tpu.memory_space<vmem>>, %arg8: memref<32x128xf32, #tpu.memory_space<vmem>>) attributes {dimension_semantics = [#tpu.dimension_semantics<parallel>], iteration_bounds = array<i64: 1>, scalar_prefetch = 0 : i64, scratch_operands = 0 : i64, tpu.core_type = #tpu.core_type<tc>, window_params = [{transform_indices = @transform_0, window_bounds = array<i64: 32, 128>}, {pipeline_mode = #tpu.pipeline_mode<synchronous>, transform_indices = @transform_1, window_bounds = array<i64: 128, 128>}, {pipeline_mode = #tpu.pipeline_mode<synchronous>, transform_indices = @transform_2, window_bounds = array<i64: 1, 128>}, {pipeline_mode = #tpu.pipeline_mode<synchronous>, transform_indices = @transform_3, window_bounds = array<i64: 3, 128, 384>}, {pipeline_mode = #tpu.pipeline_mode<synchronous>, transform_indices = @transform_4, window_bounds = array<i64: 3, 1, 128>}, {pipeline_mode = #tpu.pipeline_mode<synchronous>, transform_indices = @transform_5, window_bounds = array<i64: 128, 128>}, {pipeline_mode = #tpu.pipeline_mode<synchronous>, transform_indices = @transform_6, window_bounds = array<i64: 1, 128>}, {transform_indices = @transform_7, window_bounds = array<i64: 32, 128>}]} {
    %c0 = arith.constant 0 : index
    %c0_0 = arith.constant 0 : index
    %0 = vector.load %arg1[%c0, %c0_0] : memref<32x128xbf16, #tpu.memory_space<vmem>>, vector<32x128xbf16>
    %c0_1 = arith.constant 0 : index
    %c0_2 = arith.constant 0 : index
    %1 = vector.load %arg2[%c0_1, %c0_2] : memref<128x128xbf16, #tpu.memory_space<vmem>>, vector<128x128xbf16>
    %cst = arith.constant dense<0.000000e+00> : vector<32x128xf32>
    %2 = tpu.matmul %0, %1, %cst {dimension_numbers = #tpu.dot_dimension_numbers<[1], [0], [0], [1], [0, 0, 1, 1], [], []>} : vector<32x128xbf16>, vector<128x128xbf16>, vector<32x128xf32> -> vector<32x128xf32>
    %c0_3 = arith.constant 0 : index
    %c0_4 = arith.constant 0 : index
    %3 = vector.load %arg3[%c0_3, %c0_4] : memref<1x128xf32, #tpu.memory_space<vmem>>, vector<1x128xf32>
    %4 = vector.broadcast %3 : vector<1x128xf32> to vector<32x128xf32>
    %5 = arith.addf %2, %4 : vector<32x128xf32>
    %6 = tpu.iota {dimensions = array<i32: 1>} : vector<2x16x128xi32>
    %7 = vector.shape_cast %6 : vector<2x16x128xi32> to vector<32x128xi32>
    %c1_i32 = arith.constant 1 : i32
    %8 = vector.broadcast %c1_i32 : i32 to vector<32x128xi32>
    %9 = arith.cmpi sge, %7, %8 : vector<32x128xi32>
    %c16_i32 = arith.constant 16 : i32
    %10 = vector.broadcast %c16_i32 : i32 to vector<32x128xi32>
    %11 = arith.cmpi slt, %7, %10 : vector<32x128xi32>
    %12 = arith.andi %9, %11 : vector<32x128xi1>
    %13 = arith.extui %12 : vector<32x128xi1> to vector<32x128xi32>
    %14 = arith.sitofp %13 : vector<32x128xi32> to vector<32x128xf32>
    %c0_i32 = arith.constant 0 : i32
    %15 = vector.broadcast %c0_i32 : i32 to vector<32x128xi32>
    %16 = arith.cmpi sge, %7, %15 : vector<32x128xi32>
    %c15_i32 = arith.constant 15 : i32
    %17 = vector.broadcast %c15_i32 : i32 to vector<32x128xi32>
    %18 = arith.cmpi slt, %7, %17 : vector<32x128xi32>
    %19 = arith.andi %16, %18 : vector<32x128xi1>
    %20 = arith.extui %19 : vector<32x128xi1> to vector<32x128xi32>
    %21 = arith.sitofp %20 : vector<32x128xi32> to vector<32x128xf32>
    %22 = arith.truncf %5 : vector<32x128xf32> to vector<32x128xbf16>
    %c0_5 = arith.constant 0 : index
    %c0_6 = arith.constant 0 : index
    %c0_7 = arith.constant 0 : index
    %23 = vector.load %arg4[%c0_5, %c0_6, %c0_7] : memref<3x128x384xbf16, #tpu.memory_space<vmem>>, vector<1x128x384xbf16>
    %24 = vector.shape_cast %23 : vector<1x128x384xbf16> to vector<128x384xbf16>
    %cst_8 = arith.constant dense<0.000000e+00> : vector<32x384xf32>
    %25 = tpu.matmul %22, %24, %cst_8 {dimension_numbers = #tpu.dot_dimension_numbers<[1], [0], [0], [1], [0, 0, 1, 1], [], []>} : vector<32x128xbf16>, vector<128x384xbf16>, vector<32x384xf32> -> vector<32x384xf32>
    %26 = vector.extract_strided_slice %25 {offsets = [0, 128], sizes = [32, 128], strides = [1, 1]} : vector<32x384xf32> to vector<32x128xf32>
    %27 = vector.extract_strided_slice %25 {offsets = [0, 0], sizes = [32, 128], strides = [1, 1]} : vector<32x384xf32> to vector<32x128xf32>
    %c1_i32_9 = arith.constant 1 : i32
    %28 = tpu.dynamic_rotate %27 by %c1_i32_9 dim 0 : vector<32x128xf32>, i32 -> vector<32x128xf32>
    %29 = arith.mulf %28, %14 : vector<32x128xf32>
    %30 = arith.addf %26, %29 : vector<32x128xf32>
    %31 = vector.extract_strided_slice %25 {offsets = [0, 256], sizes = [32, 128], strides = [1, 1]} : vector<32x384xf32> to vector<32x128xf32>
    %c31_i32 = arith.constant 31 : i32
    %32 = tpu.dynamic_rotate %31 by %c31_i32 dim 0 : vector<32x128xf32>, i32 -> vector<32x128xf32>
    %33 = arith.mulf %32, %21 : vector<32x128xf32>
    %34 = arith.addf %30, %33 : vector<32x128xf32>
    %c0_10 = arith.constant 0 : index
    %c0_11 = arith.constant 0 : index
    %c0_12 = arith.constant 0 : index
    %35 = vector.load %arg5[%c0_10, %c0_11, %c0_12] : memref<3x1x128xf32, #tpu.memory_space<vmem>>, vector<1x1x128xf32>
    %36 = vector.shape_cast %35 : vector<1x1x128xf32> to vector<1x128xf32>
    %37 = vector.broadcast %36 : vector<1x128xf32> to vector<32x128xf32>
    %38 = arith.addf %34, %37 : vector<32x128xf32>
    %cst_13 = arith.constant 0.000000e+00 : f32
    %39 = vector.broadcast %cst_13 : f32 to vector<32x128xf32>
    %40 = arith.maximumf %38, %39 : vector<32x128xf32>
    %41 = arith.addf %5, %40 : vector<32x128xf32>
    %42 = arith.truncf %41 : vector<32x128xf32> to vector<32x128xbf16>
    %c1 = arith.constant 1 : index
    %c0_14 = arith.constant 0 : index
    %c0_15 = arith.constant 0 : index
    %43 = vector.load %arg4[%c1, %c0_14, %c0_15] : memref<3x128x384xbf16, #tpu.memory_space<vmem>>, vector<1x128x384xbf16>
    %44 = vector.shape_cast %43 : vector<1x128x384xbf16> to vector<128x384xbf16>
    %cst_16 = arith.constant dense<0.000000e+00> : vector<32x384xf32>
    %45 = tpu.matmul %42, %44, %cst_16 {dimension_numbers = #tpu.dot_dimension_numbers<[1], [0], [0], [1], [0, 0, 1, 1], [], []>} : vector<32x128xbf16>, vector<128x384xbf16>, vector<32x384xf32> -> vector<32x384xf32>
    %46 = vector.extract_strided_slice %45 {offsets = [0, 128], sizes = [32, 128], strides = [1, 1]} : vector<32x384xf32> to vector<32x128xf32>
    %47 = vector.extract_strided_slice %45 {offsets = [0, 0], sizes = [32, 128], strides = [1, 1]} : vector<32x384xf32> to vector<32x128xf32>
    %c1_i32_17 = arith.constant 1 : i32
    %48 = tpu.dynamic_rotate %47 by %c1_i32_17 dim 0 : vector<32x128xf32>, i32 -> vector<32x128xf32>
    %49 = arith.mulf %48, %14 : vector<32x128xf32>
    %50 = arith.addf %46, %49 : vector<32x128xf32>
    %51 = vector.extract_strided_slice %45 {offsets = [0, 256], sizes = [32, 128], strides = [1, 1]} : vector<32x384xf32> to vector<32x128xf32>
    %c31_i32_18 = arith.constant 31 : i32
    %52 = tpu.dynamic_rotate %51 by %c31_i32_18 dim 0 : vector<32x128xf32>, i32 -> vector<32x128xf32>
    %53 = arith.mulf %52, %21 : vector<32x128xf32>
    %54 = arith.addf %50, %53 : vector<32x128xf32>
    %c1_19 = arith.constant 1 : index
    %c0_20 = arith.constant 0 : index
    %c0_21 = arith.constant 0 : index
    %55 = vector.load %arg5[%c1_19, %c0_20, %c0_21] : memref<3x1x128xf32, #tpu.memory_space<vmem>>, vector<1x1x128xf32>
    %56 = vector.shape_cast %55 : vector<1x1x128xf32> to vector<1x128xf32>
    %57 = vector.broadcast %56 : vector<1x128xf32> to vector<32x128xf32>
    %58 = arith.addf %54, %57 : vector<32x128xf32>
    %cst_22 = arith.constant 0.000000e+00 : f32
    %59 = vector.broadcast %cst_22 : f32 to vector<32x128xf32>
    %60 = arith.maximumf %58, %59 : vector<32x128xf32>
    %61 = arith.addf %41, %60 : vector<32x128xf32>
    %62 = arith.truncf %61 : vector<32x128xf32> to vector<32x128xbf16>
    %c2 = arith.constant 2 : index
    %c0_23 = arith.constant 0 : index
    %c0_24 = arith.constant 0 : index
    %63 = vector.load %arg4[%c2, %c0_23, %c0_24] : memref<3x128x384xbf16, #tpu.memory_space<vmem>>, vector<1x128x384xbf16>
    %64 = vector.shape_cast %63 : vector<1x128x384xbf16> to vector<128x384xbf16>
    %cst_25 = arith.constant dense<0.000000e+00> : vector<32x384xf32>
    %65 = tpu.matmul %62, %64, %cst_25 {dimension_numbers = #tpu.dot_dimension_numbers<[1], [0], [0], [1], [0, 0, 1, 1], [], []>} : vector<32x128xbf16>, vector<128x384xbf16>, vector<32x384xf32> -> vector<32x384xf32>
    %66 = vector.extract_strided_slice %65 {offsets = [0, 128], sizes = [32, 128], strides = [1, 1]} : vector<32x384xf32> to vector<32x128xf32>
    %67 = vector.extract_strided_slice %65 {offsets = [0, 0], sizes = [32, 128], strides = [1, 1]} : vector<32x384xf32> to vector<32x128xf32>
    %c1_i32_26 = arith.constant 1 : i32
    %68 = tpu.dynamic_rotate %67 by %c1_i32_26 dim 0 : vector<32x128xf32>, i32 -> vector<32x128xf32>
    %69 = arith.mulf %68, %14 : vector<32x128xf32>
    %70 = arith.addf %66, %69 : vector<32x128xf32>
    %71 = vector.extract_strided_slice %65 {offsets = [0, 256], sizes = [32, 128], strides = [1, 1]} : vector<32x384xf32> to vector<32x128xf32>
    %c31_i32_27 = arith.constant 31 : i32
    %72 = tpu.dynamic_rotate %71 by %c31_i32_27 dim 0 : vector<32x128xf32>, i32 -> vector<32x128xf32>
    %73 = arith.mulf %72, %21 : vector<32x128xf32>
    %74 = arith.addf %70, %73 : vector<32x128xf32>
    %c2_28 = arith.constant 2 : index
    %c0_29 = arith.constant 0 : index
    %c0_30 = arith.constant 0 : index
    %75 = vector.load %arg5[%c2_28, %c0_29, %c0_30] : memref<3x1x128xf32, #tpu.memory_space<vmem>>, vector<1x1x128xf32>
    %76 = vector.shape_cast %75 : vector<1x1x128xf32> to vector<1x128xf32>
    %77 = vector.broadcast %76 : vector<1x128xf32> to vector<32x128xf32>
    %78 = arith.addf %74, %77 : vector<32x128xf32>
    %cst_31 = arith.constant 0.000000e+00 : f32
    %79 = vector.broadcast %cst_31 : f32 to vector<32x128xf32>
    %80 = arith.maximumf %78, %79 : vector<32x128xf32>
    %81 = arith.addf %61, %80 : vector<32x128xf32>
    %82 = arith.truncf %81 : vector<32x128xf32> to vector<32x128xbf16>
    %c0_32 = arith.constant 0 : index
    %c0_33 = arith.constant 0 : index
    %83 = vector.load %arg6[%c0_32, %c0_33] : memref<128x128xbf16, #tpu.memory_space<vmem>>, vector<128x128xbf16>
    %cst_34 = arith.constant dense<0.000000e+00> : vector<32x128xf32>
    %84 = tpu.matmul %82, %83, %cst_34 {dimension_numbers = #tpu.dot_dimension_numbers<[1], [0], [0], [1], [0, 0, 1, 1], [], []>} : vector<32x128xbf16>, vector<128x128xbf16>, vector<32x128xf32> -> vector<32x128xf32>
    %c0_35 = arith.constant 0 : index
    %c0_36 = arith.constant 0 : index
    %85 = vector.load %arg7[%c0_35, %c0_36] : memref<1x128xf32, #tpu.memory_space<vmem>>, vector<1x128xf32>
    %86 = vector.broadcast %85 : vector<1x128xf32> to vector<32x128xf32>
    %87 = arith.addf %84, %86 : vector<32x128xf32>
    %c0_37 = arith.constant 0 : index
    %c0_38 = arith.constant 0 : index
    %88 = vector.load %arg8[%c0_37, %c0_38] : memref<32x128xf32, #tpu.memory_space<vmem>>, vector<32x128xf32>
    tpu.vector_store %arg8[%c0_37, %c0_38], %87 {strides = array<i32>} : memref<32x128xf32, #tpu.memory_space<vmem>>, vector<32x128xf32>,
    return
  }
  func.func @transform_0(%arg0: i32) -> (i32, i32) {
    %c0_i32 = arith.constant 0 : i32
    %c0_i32_0 = arith.constant 0 : i32
    return %arg0, %c0_i32 : i32, i32
  }
  func.func @transform_1(%arg0: i32) -> (i32, i32) {
    %c0_i32 = arith.constant 0 : i32
    %c0_i32_0 = arith.constant 0 : i32
    %c0_i32_1 = arith.constant 0 : i32
    return %c0_i32, %c0_i32_0 : i32, i32
  }
  func.func @transform_2(%arg0: i32) -> (i32, i32) {
    %c0_i32 = arith.constant 0 : i32
    %c0_i32_0 = arith.constant 0 : i32
    %c0_i32_1 = arith.constant 0 : i32
    return %c0_i32, %c0_i32_0 : i32, i32
  }
  func.func @transform_3(%arg0: i32) -> (i32, i32, i32) {
    %c0_i32 = arith.constant 0 : i32
    %c0_i32_0 = arith.constant 0 : i32
    %c0_i32_1 = arith.constant 0 : i32
    %c0_i32_2 = arith.constant 0 : i32
    return %c0_i32, %c0_i32_0, %c0_i32_1 : i32, i32, i32
  }
  func.func @transform_4(%arg0: i32) -> (i32, i32, i32) {
    %c0_i32 = arith.constant 0 : i32
    %c0_i32_0 = arith.constant 0 : i32
    %c0_i32_1 = arith.constant 0 : i32
    %c0_i32_2 = arith.constant 0 : i32
    return %c0_i32, %c0_i32_0, %c0_i32_1 : i32, i32, i32
  }
  func.func @transform_5(%arg0: i32) -> (i32, i32) {
    %c0_i32 = arith.constant 0 : i32
    %c0_i32_0 = arith.constant 0 : i32
    %c0_i32_1 = arith.constant 0 : i32
    return %c0_i32, %c0_i32_0 : i32, i32
  }
  func.func @transform_6(%arg0: i32) -> (i32, i32) {
    %c0_i32 = arith.constant 0 : i32
    %c0_i32_0 = arith.constant 0 : i32
    %c0_i32_1 = arith.constant 0 : i32
    return %c0_i32, %c0_i32_0 : i32, i32
  }
  func.func @transform_7(%arg0: i32) -> (i32, i32) {
    %c0_i32 = arith.constant 0 : i32
    %c0_i32_0 = arith.constant 0 : i32
    return %arg0, %c0_i32 : i32, i32
  }
}

module attributes {stable_mosaic.version = 11 : i64} {
  func.func @kernel(%arg0: i32, %arg1: memref<32x128xbf16, #tpu.memory_space<vmem>>, %arg2: memref<128x128xbf16, #tpu.memory_space<vmem>>, %arg3: memref<1x128xf32, #tpu.memory_space<vmem>>, %arg4: memref<3x128x384xbf16, #tpu.memory_space<vmem>>, %arg5: memref<3x1x128xf32, #tpu.memory_space<vmem>>, %arg6: memref<128x128xbf16, #tpu.memory_space<vmem>>, %arg7: memref<1x128xf32, #tpu.memory_space<vmem>>, %arg8: memref<32x128xf32, #tpu.memory_space<vmem>>) attributes {dimension_semantics = [#tpu.dimension_semantics<parallel>], iteration_bounds = array<i64: 1>, scalar_prefetch = 0 : i64, scratch_operands = 0 : i64, tpu.core_type = #tpu.core_type<tc>, window_params = [{transform_indices = @transform_0, window_bounds = array<i64: 32, 128>}, {pipeline_mode = #tpu.pipeline_mode<synchronous>, transform_indices = @transform_1, window_bounds = array<i64: 128, 128>}, {pipeline_mode = #tpu.pipeline_mode<synchronous>, transform_indices = @transform_2, window_bounds = array<i64: 1, 128>}, {pipeline_mode = #tpu.pipeline_mode<synchronous>, transform_indices = @transform_3, window_bounds = array<i64: 3, 128, 384>}, {pipeline_mode = #tpu.pipeline_mode<synchronous>, transform_indices = @transform_4, window_bounds = array<i64: 3, 1, 128>}, {pipeline_mode = #tpu.pipeline_mode<synchronous>, transform_indices = @transform_5, window_bounds = array<i64: 128, 128>}, {pipeline_mode = #tpu.pipeline_mode<synchronous>, transform_indices = @transform_6, window_bounds = array<i64: 1, 128>}, {transform_indices = @transform_7, window_bounds = array<i64: 32, 128>}]} {
    %c0 = arith.constant 0 : index
    %c0_0 = arith.constant 0 : index
    %0 = vector.load %arg1[%c0, %c0_0] : memref<32x128xbf16, #tpu.memory_space<vmem>>, vector<32x128xbf16>
    %c0_1 = arith.constant 0 : index
    %c0_2 = arith.constant 0 : index
    %1 = vector.load %arg2[%c0_1, %c0_2] : memref<128x128xbf16, #tpu.memory_space<vmem>>, vector<128x128xbf16>
    %cst = arith.constant dense<0.000000e+00> : vector<32x128xf32>
    %2 = tpu.matmul %0, %1, %cst {dimension_numbers = #tpu.dot_dimension_numbers<[1], [0], [0], [1], [0, 0, 1, 1], [], []>} : vector<32x128xbf16>, vector<128x128xbf16>, vector<32x128xf32> -> vector<32x128xf32>
    %c0_3 = arith.constant 0 : index
    %c0_4 = arith.constant 0 : index
    %3 = vector.load %arg3[%c0_3, %c0_4] : memref<1x128xf32, #tpu.memory_space<vmem>>, vector<1x128xf32>
    %4 = vector.broadcast %3 : vector<1x128xf32> to vector<32x128xf32>
    %5 = arith.addf %2, %4 : vector<32x128xf32>
    %6 = tpu.iota {dimensions = array<i32: 1>} : vector<2x16x128xi32>
    %7 = vector.shape_cast %6 : vector<2x16x128xi32> to vector<32x128xi32>
    %c1_i32 = arith.constant 1 : i32
    %8 = vector.broadcast %c1_i32 : i32 to vector<32x128xi32>
    %9 = arith.cmpi sge, %7, %8 : vector<32x128xi32>
    %c16_i32 = arith.constant 16 : i32
    %10 = vector.broadcast %c16_i32 : i32 to vector<32x128xi32>
    %11 = arith.cmpi slt, %7, %10 : vector<32x128xi32>
    %12 = arith.andi %9, %11 : vector<32x128xi1>
    %13 = arith.extui %12 : vector<32x128xi1> to vector<32x128xi32>
    %14 = arith.sitofp %13 : vector<32x128xi32> to vector<32x128xf32>
    %c0_i32 = arith.constant 0 : i32
    %15 = vector.broadcast %c0_i32 : i32 to vector<32x128xi32>
    %16 = arith.cmpi sge, %7, %15 : vector<32x128xi32>
    %c15_i32 = arith.constant 15 : i32
    %17 = vector.broadcast %c15_i32 : i32 to vector<32x128xi32>
    %18 = arith.cmpi slt, %7, %17 : vector<32x128xi32>
    %19 = arith.andi %16, %18 : vector<32x128xi1>
    %20 = arith.extui %19 : vector<32x128xi1> to vector<32x128xi32>
    %21 = arith.sitofp %20 : vector<32x128xi32> to vector<32x128xf32>
    %22 = arith.truncf %5 : vector<32x128xf32> to vector<32x128xbf16>
    %c0_5 = arith.constant 0 : index
    %c0_6 = arith.constant 0 : index
    %c0_7 = arith.constant 0 : index
    %23 = vector.load %arg4[%c0_5, %c0_6, %c0_7] : memref<3x128x384xbf16, #tpu.memory_space<vmem>>, vector<1x128x384xbf16>
    %24 = vector.shape_cast %23 : vector<1x128x384xbf16> to vector<128x384xbf16>
    %cst_8 = arith.constant dense<0.000000e+00> : vector<32x384xf32>
    %25 = tpu.matmul %22, %24, %cst_8 {dimension_numbers = #tpu.dot_dimension_numbers<[1], [0], [0], [1], [0, 0, 1, 1], [], []>} : vector<32x128xbf16>, vector<128x384xbf16>, vector<32x384xf32> -> vector<32x384xf32>
    %26 = vector.extract_strided_slice %25 {offsets = [0, 128], sizes = [32, 128], strides = [1, 1]} : vector<32x384xf32> to vector<32x128xf32>
    %27 = vector.extract_strided_slice %25 {offsets = [0, 0], sizes = [32, 128], strides = [1, 1]} : vector<32x384xf32> to vector<32x128xf32>
    %c1_i32_9 = arith.constant 1 : i32
    %28 = tpu.dynamic_rotate %27 by %c1_i32_9 dim 0 : vector<32x128xf32>, i32 -> vector<32x128xf32>
    %29 = arith.mulf %28, %14 : vector<32x128xf32>
    %30 = arith.addf %26, %29 : vector<32x128xf32>
    %31 = vector.extract_strided_slice %25 {offsets = [0, 256], sizes = [32, 128], strides = [1, 1]} : vector<32x384xf32> to vector<32x128xf32>
    %c31_i32 = arith.constant 31 : i32
    %32 = tpu.dynamic_rotate %31 by %c31_i32 dim 0 : vector<32x128xf32>, i32 -> vector<32x128xf32>
    %33 = arith.mulf %32, %21 : vector<32x128xf32>
    %34 = arith.addf %30, %33 : vector<32x128xf32>
    %c0_10 = arith.constant 0 : index
    %c0_11 = arith.constant 0 : index
    %c0_12 = arith.constant 0 : index
    %35 = vector.load %arg5[%c0_10, %c0_11, %c0_12] : memref<3x1x128xf32, #tpu.memory_space<vmem>>, vector<1x1x128xf32>
    %36 = vector.shape_cast %35 : vector<1x1x128xf32> to vector<1x128xf32>
    %37 = vector.broadcast %36 : vector<1x128xf32> to vector<32x128xf32>
    %38 = arith.addf %34, %37 : vector<32x128xf32>
    %cst_13 = arith.constant 0.000000e+00 : f32
    %39 = vector.broadcast %cst_13 : f32 to vector<32x128xf32>
    %40 = arith.maximumf %38, %39 : vector<32x128xf32>
    %41 = arith.addf %5, %40 : vector<32x128xf32>
    %42 = arith.truncf %41 : vector<32x128xf32> to vector<32x128xbf16>
    %c1 = arith.constant 1 : index
    %c0_14 = arith.constant 0 : index
    %c0_15 = arith.constant 0 : index
    %43 = vector.load %arg4[%c1, %c0_14, %c0_15] : memref<3x128x384xbf16, #tpu.memory_space<vmem>>, vector<1x128x384xbf16>
    %44 = vector.shape_cast %43 : vector<1x128x384xbf16> to vector<128x384xbf16>
    %cst_16 = arith.constant dense<0.000000e+00> : vector<32x384xf32>
    %45 = tpu.matmul %42, %44, %cst_16 {dimension_numbers = #tpu.dot_dimension_numbers<[1], [0], [0], [1], [0, 0, 1, 1], [], []>} : vector<32x128xbf16>, vector<128x384xbf16>, vector<32x384xf32> -> vector<32x384xf32>
    %46 = vector.extract_strided_slice %45 {offsets = [0, 128], sizes = [32, 128], strides = [1, 1]} : vector<32x384xf32> to vector<32x128xf32>
    %47 = vector.extract_strided_slice %45 {offsets = [0, 0], sizes = [32, 128], strides = [1, 1]} : vector<32x384xf32> to vector<32x128xf32>
    %c1_i32_17 = arith.constant 1 : i32
    %48 = tpu.dynamic_rotate %47 by %c1_i32_17 dim 0 : vector<32x128xf32>, i32 -> vector<32x128xf32>
    %49 = arith.mulf %48, %14 : vector<32x128xf32>
    %50 = arith.addf %46, %49 : vector<32x128xf32>
    %51 = vector.extract_strided_slice %45 {offsets = [0, 256], sizes = [32, 128], strides = [1, 1]} : vector<32x384xf32> to vector<32x128xf32>
    %c31_i32_18 = arith.constant 31 : i32
    %52 = tpu.dynamic_rotate %51 by %c31_i32_18 dim 0 : vector<32x128xf32>, i32 -> vector<32x128xf32>
    %53 = arith.mulf %52, %21 : vector<32x128xf32>
    %54 = arith.addf %50, %53 : vector<32x128xf32>
    %c1_19 = arith.constant 1 : index
    %c0_20 = arith.constant 0 : index
    %c0_21 = arith.constant 0 : index
    %55 = vector.load %arg5[%c1_19, %c0_20, %c0_21] : memref<3x1x128xf32, #tpu.memory_space<vmem>>, vector<1x1x128xf32>
    %56 = vector.shape_cast %55 : vector<1x1x128xf32> to vector<1x128xf32>
    %57 = vector.broadcast %56 : vector<1x128xf32> to vector<32x128xf32>
    %58 = arith.addf %54, %57 : vector<32x128xf32>
    %cst_22 = arith.constant 0.000000e+00 : f32
    %59 = vector.broadcast %cst_22 : f32 to vector<32x128xf32>
    %60 = arith.maximumf %58, %59 : vector<32x128xf32>
    %61 = arith.addf %41, %60 : vector<32x128xf32>
    %62 = arith.truncf %61 : vector<32x128xf32> to vector<32x128xbf16>
    %c2 = arith.constant 2 : index
    %c0_23 = arith.constant 0 : index
    %c0_24 = arith.constant 0 : index
    %63 = vector.load %arg4[%c2, %c0_23, %c0_24] : memref<3x128x384xbf16, #tpu.memory_space<vmem>>, vector<1x128x384xbf16>
    %64 = vector.shape_cast %63 : vector<1x128x384xbf16> to vector<128x384xbf16>
    %cst_25 = arith.constant dense<0.000000e+00> : vector<32x384xf32>
    %65 = tpu.matmul %62, %64, %cst_25 {dimension_numbers = #tpu.dot_dimension_numbers<[1], [0], [0], [1], [0, 0, 1, 1], [], []>} : vector<32x128xbf16>, vector<128x384xbf16>, vector<32x384xf32> -> vector<32x384xf32>
    %66 = vector.extract_strided_slice %65 {offsets = [0, 128], sizes = [32, 128], strides = [1, 1]} : vector<32x384xf32> to vector<32x128xf32>
    %67 = vector.extract_strided_slice %65 {offsets = [0, 0], sizes = [32, 128], strides = [1, 1]} : vector<32x384xf32> to vector<32x128xf32>
    %c1_i32_26 = arith.constant 1 : i32
    %68 = tpu.dynamic_rotate %67 by %c1_i32_26 dim 0 : vector<32x128xf32>, i32 -> vector<32x128xf32>
    %69 = arith.mulf %68, %14 : vector<32x128xf32>
    %70 = arith.addf %66, %69 : vector<32x128xf32>
    %71 = vector.extract_strided_slice %65 {offsets = [0, 256], sizes = [32, 128], strides = [1, 1]} : vector<32x384xf32> to vector<32x128xf32>
    %c31_i32_27 = arith.constant 31 : i32
    %72 = tpu.dynamic_rotate %71 by %c31_i32_27 dim 0 : vector<32x128xf32>, i32 -> vector<32x128xf32>
    %73 = arith.mulf %72, %21 : vector<32x128xf32>
    %74 = arith.addf %70, %73 : vector<32x128xf32>
    %c2_28 = arith.constant 2 : index
    %c0_29 = arith.constant 0 : index
    %c0_30 = arith.constant 0 : index
    %75 = vector.load %arg5[%c2_28, %c0_29, %c0_30] : memref<3x1x128xf32, #tpu.memory_space<vmem>>, vector<1x1x128xf32>
    %76 = vector.shape_cast %75 : vector<1x1x128xf32> to vector<1x128xf32>
    %77 = vector.broadcast %76 : vector<1x128xf32> to vector<32x128xf32>
    %78 = arith.addf %74, %77 : vector<32x128xf32>
    %cst_31 = arith.constant 0.000000e+00 : f32
    %79 = vector.broadcast %cst_31 : f32 to vector<32x128xf32>
    %80 = arith.maximumf %78, %79 : vector<32x128xf32>
    %81 = arith.addf %61, %80 : vector<32x128xf32>
    %82 = arith.truncf %81 : vector<32x128xf32> to vector<32x128xbf16>
    %c0_32 = arith.constant 0 : index
    %c0_33 = arith.constant 0 : index
    %83 = vector.load %arg6[%c0_32, %c0_33] : memref<128x128xbf16, #tpu.memory_space<vmem>>, vector<128x128xbf16>
    %cst_34 = arith.constant dense<0.000000e+00> : vector<32x128xf32>
    %84 = tpu.matmul %82, %83, %cst_34 {dimension_numbers = #tpu.dot_dimension_numbers<[1], [0], [0], [1], [0, 0, 1, 1], [], []>} : vector<32x128xbf16>, vector<128x128xbf16>, vector<32x128xf32> -> vector<32x128xf32>
    %c0_35 = arith.constant 0 : index
    %c0_36 = arith.constant 0 : index
    %85 = vector.load %arg7[%c0_35, %c0_36] : memref<1x128xf32, #tpu.memory_space<vmem>>, vector<1x128xf32>
    %86 = vector.broadcast %85 : vector<1x128xf32> to vector<32x128xf32>
    %87 = arith.addf %84, %86 : vector<32x128xf32>
    %c0_37 = arith.constant 0 : index
    %c0_38 = arith.constant 0 : index
    %88 = vector.load %arg8[%c0_37, %c0_38] : memref<32x128xf32, #tpu.memory_space<vmem>>, vector<32x128xf32>
    tpu.vector_store %arg8[%c0_37, %c0_38], %87 {strides = array<i32>} : memref<32x128xf32, #tpu.memory_space<vmem>>, vector<32x128xf32>,
    return
  }
  func.func @transform_0(%arg0: i32) -> (i32, i32) {
    %c0_i32 = arith.constant 0 : i32
    %c0_i32_0 = arith.constant 0 : i32
    return %arg0, %c0_i32 : i32, i32
  }
  func.func @transform_1(%arg0: i32) -> (i32, i32) {
    %c0_i32 = arith.constant 0 : i32
    %c0_i32_0 = arith.constant 0 : i32
    %c0_i32_1 = arith.constant 0 : i32
    return %c0_i32, %c0_i32_0 : i32, i32
  }
  func.func @transform_2(%arg0: i32) -> (i32, i32) {
    %c0_i32 = arith.constant 0 : i32
    %c0_i32_0 = arith.constant 0 : i32
    %c0_i32_1 = arith.constant 0 : i32
    return %c0_i32, %c0_i32_0 : i32, i32
  }
  func.func @transform_3(%arg0: i32) -> (i32, i32, i32) {
    %c0_i32 = arith.constant 0 : i32
    %c0_i32_0 = arith.constant 0 : i32
    %c0_i32_1 = arith.constant 0 : i32
    %c0_i32_2 = arith.constant 0 : i32
    return %c0_i32, %c0_i32_0, %c0_i32_1 : i32, i32, i32
  }
  func.func @transform_4(%arg0: i32) -> (i32, i32, i32) {
    %c0_i32 = arith.constant 0 : i32
    %c0_i32_0 = arith.constant 0 : i32
    %c0_i32_1 = arith.constant 0 : i32
    %c0_i32_2 = arith.constant 0 : i32
    return %c0_i32, %c0_i32_0, %c0_i32_1 : i32, i32, i32
  }
  func.func @transform_5(%arg0: i32) -> (i32, i32) {
    %c0_i32 = arith.constant 0 : i32
    %c0_i32_0 = arith.constant 0 : i32
    %c0_i32_1 = arith.constant 0 : i32
    return %c0_i32, %c0_i32_0 : i32, i32
  }
  func.func @transform_6(%arg0: i32) -> (i32, i32) {
    %c0_i32 = arith.constant 0 : i32
    %c0_i32_0 = arith.constant 0 : i32
    %c0_i32_1 = arith.constant 0 : i32
    return %c0_i32, %c0_i32_0 : i32, i32
  }
  func.func @transform_7(%arg0: i32) -> (i32, i32) {
    %c0_i32 = arith.constant 0 : i32
    %c0_i32_0 = arith.constant 0 : i32
    return %arg0, %c0_i32 : i32, i32
  }
}

</mosaic_0001>

<llo_original>
// kernel: tpu_custom_call.1
$region0: #{tpu_custom_call.1}
  #allocation0 [shape = 'u32[]', space=smem, size = 0x4, offset = 0x4, fixed_abs, tag = 'smem constant byte address 0x4 - core index']
  #allocation1 [shape = 'u32[144,128]{1,0:T(1,128)}', space=vmem, size = 0x12000, scoped, tag = 'internal scratch']
  %s0 = inlined_call_operand.hbm [shape: bf16[32,128], index: 0, kind: input, shape index: {}]
  %s1 = inlined_call_operand.hbm [shape: bf16[128,128], index: 1, kind: input, shape index: {}]
  %s2 = inlined_call_operand.vmem [shape: f32[1,128], index: 2, kind: input, shape index: {}]
  %s3 = inlined_call_operand.hbm [shape: bf16[3,128,384], index: 3, kind: input, shape index: {}]
  %s4 = inlined_call_operand.vmem [shape: f32[3,1,128], index: 4, kind: input, shape index: {}]
  %s5 = inlined_call_operand.hbm [shape: bf16[128,128], index: 5, kind: input, shape index: {}]
  %s6 = inlined_call_operand.vmem [shape: f32[1,128], index: 6, kind: input, shape index: {}]
  %s7 = inlined_call_operand.hbm [shape: f32[32,128], index: 7, kind: output, shape index: {}]
  %s8 = sld [smem:[#allocation0]]
  $region54: #{tpu_custom_call.1} parent=0
    _
  %s10 = ssub.s32 1, %s8
  %s11 = scalar_select 0, %s10, %s8
  $region1: #{tpu_custom_call.1} parent=0
    #allocation2 [shape = 'u8[8192]{0}', space=vmem, size = 0x2000, scoped, tag = 'input window, operand 0, single buffered']
    #allocation3 [shape = 's32[1]{0}', space=sflag, size = 0x4, scoped, tag = 'scoped memory for tpu_custom_call.1']
    #allocation4 [shape = 's32[1]{0}', space=sflag, size = 0x4, scoped, tag = 'scoped memory for tpu_custom_call.1']
    #allocation5 [shape = 'u8[32768]{0}', space=vmem, size = 0x8000, scoped, tag = 'input window, operand 1, single buffered']
    #allocation6 [shape = 's32[1]{0}', space=sflag, size = 0x4, scoped, tag = 'scoped memory for tpu_custom_call.1']
    #allocation7 [shape = 'u8[294912]{0}', space=vmem, size = 0x48000, scoped, tag = 'input window, operand 3, single buffered']
    #allocation8 [shape = 'u8[32768]{0}', space=vmem, size = 0x8000, scoped, tag = 'input window, operand 5, single buffered']
    #allocation9 [shape = 's32[1]{0}', space=sflag, size = 0x4, scoped, tag = 'scoped memory for tpu_custom_call.1']
    #allocation10 [shape = 'u8[16384]{0}', space=vmem, size = 0x4000, scoped, tag = 'output window, operand 0, single buffered']
    %12 = vsyncpa [#allocation3], 0
    %13 = vsyncpa [#allocation6], 0
    %14 = vsyncpa [#allocation9], 0
    %15 = vsyncpa [#allocation4], 0
    // Predicated region
    $region2: #{tpu_custom_call.1} parent=1 // pred_check
      _
    $region3: #{tpu_custom_call.1} parent=1 // pred_check_branch
      %17 = sbr.rel (0) target = $region5
    $region4: #{tpu_custom_call.1} parent=1 // pred_region
      %s19 = ssub.s32 256, 256
      %20 = vsyncadd [#allocation3], %s19
      %s21 = sshll.u32 [#allocation2], 4
      %s22 = int_to_ptr.vmem [resolvable:$true] %s21
      %27 = dma.hbm_to_vmem [thread:$0]  %s0, 256, %s22, [#allocation3], 64, 64, 4
    $region5: #{tpu_custom_call.1} parent=1 // pred_fallthru
      _
    // Predicated region
    $region6: #{tpu_custom_call.1} parent=1 // pred_check
      _
    $region7: #{tpu_custom_call.1} parent=1 // pred_check_branch
      %29 = sbr.rel (0) target = $region9
    $region8: #{tpu_custom_call.1} parent=1 // pred_region
      %s31 = ssub.s32 1024, 1024
      %32 = vsyncadd [#allocation6], %s31
      %s33 = sshll.u32 [#allocation5], 4
      %s34 = int_to_ptr.vmem [resolvable:$true] %s33
      %39 = dma.hbm_to_vmem [thread:$0]  %s1, 1024, %s34, [#allocation6], 64, 64, 4
    $region9: #{tpu_custom_call.1} parent=1 // pred_fallthru
      _
    // Predicated region
    $region10: #{tpu_custom_call.1} parent=1 // pred_check
      _
    $region11: #{tpu_custom_call.1} parent=1 // pred_check_branch
      %41 = sbr.rel (0) target = $region13
    $region12: #{tpu_custom_call.1} parent=1 // pred_region
      _
    $region13: #{tpu_custom_call.1} parent=1 // pred_fallthru
      _
    // Predicated region
    $region14: #{tpu_custom_call.1} parent=1 // pred_check
      _
    $region15: #{tpu_custom_call.1} parent=1 // pred_check_branch
      %43 = sbr.rel (0) target = $region17
    $region16: #{tpu_custom_call.1} parent=1 // pred_region
      %s45 = ssub.s32 9216, 9216
      %46 = vsyncadd [#allocation6], %s45
      %s47 = sshll.u32 [#allocation7], 4
      %s48 = int_to_ptr.vmem [resolvable:$true] %s47
      %53 = dma.hbm_to_vmem [thread:$0]  %s3, 9216, %s48, [#allocation6], 192, 192, 12
    $region17: #{tpu_custom_call.1} parent=1 // pred_fallthru
      _
    // Predicated region
    $region18: #{tpu_custom_call.1} parent=1 // pred_check
      _
    $region19: #{tpu_custom_call.1} parent=1 // pred_check_branch
      %55 = sbr.rel (0) target = $region21
    $region20: #{tpu_custom_call.1} parent=1 // pred_region
      _
    $region21: #{tpu_custom_call.1} parent=1 // pred_fallthru
      _
    // Predicated region
    $region22: #{tpu_custom_call.1} parent=1 // pred_check
      _
    $region23: #{tpu_custom_call.1} parent=1 // pred_check_branch
      %57 = sbr.rel (0) target = $region25
    $region24: #{tpu_custom_call.1} parent=1 // pred_region
      %s59 = ssub.s32 1024, 1024
      %60 = vsyncadd [#allocation9], %s59
      %s61 = sshll.u32 [#allocation8], 4
      %s62 = int_to_ptr.vmem [resolvable:$true] %s61
      %67 = dma.hbm_to_vmem [thread:$0]  %s5, 1024, %s62, [#allocation9], 64, 64, 4
    $region25: #{tpu_custom_call.1} parent=1 // pred_fallthru
      _
    // Predicated region
    $region26: #{tpu_custom_call.1} parent=1 // pred_check
      _
    $region27: #{tpu_custom_call.1} parent=1 // pred_check_branch
      %69 = sbr.rel (0) target = $region29
    $region28: #{tpu_custom_call.1} parent=1 // pred_region
      _
    $region29: #{tpu_custom_call.1} parent=1 // pred_fallthru
      _
    // Predicated region
    $region30: #{tpu_custom_call.1} parent=1 // pred_check
      _
    $region31: #{tpu_custom_call.1} parent=1 // pred_check_branch
      %71 = sbr.rel (0) target = $region33
    $region32: #{tpu_custom_call.1} parent=1 // pred_region
      %72 = dma.done [#allocation3], 256
    $region33: #{tpu_custom_call.1} parent=1 // pred_fallthru
      _
    // Predicated region
    $region34: #{tpu_custom_call.1} parent=1 // pred_check
      _
    $region35: #{tpu_custom_call.1} parent=1 // pred_check_branch
      %74 = sbr.rel (0) target = $region37
    $region36: #{tpu_custom_call.1} parent=1 // pred_region
      %75 = dma.done [#allocation6], 1024
    $region37: #{tpu_custom_call.1} parent=1 // pred_fallthru
      _
    // Predicated region
    $region38: #{tpu_custom_call.1} parent=1 // pred_check
      _
    $region39: #{tpu_custom_call.1} parent=1 // pred_check_branch
      %77 = sbr.rel (0) target = $region41
    $region40: #{tpu_custom_call.1} parent=1 // pred_region
      %78 = dma.done [#allocation6], 9216
    $region41: #{tpu_custom_call.1} parent=1 // pred_fallthru
      _
    // Predicated region
    $region42: #{tpu_custom_call.1} parent=1 // pred_check
      _
    $region43: #{tpu_custom_call.1} parent=1 // pred_check_branch
      %80 = sbr.rel (0) target = $region45
    $region44: #{tpu_custom_call.1} parent=1 // pred_region
      %81 = dma.done [#allocation9], 1024
    $region45: #{tpu_custom_call.1} parent=1 // pred_fallthru
      _
    %v83 = vld [vmem:[#allocation2] sm:$0xf]
    %v84 = vld [vmem:[#allocation2 + $0x4] sm:$0xf]
    %v85 = vld [vmem:[#allocation2 + $0x8] sm:$0xf]
    %v86 = vld [vmem:[#allocation2 + $0xc] sm:$0xf]
    %v87 = vld [vmem:[#allocation5] sm:$0xf]
    %v88 = vld [vmem:[#allocation5 + $0x4] sm:$0xf]
    %v89 = vld [vmem:[#allocation5 + $0x8] sm:$0xf]
    %v90 = vld [vmem:[#allocation5 + $0xc] sm:$0xf]
    %v91 = vld [vmem:[#allocation5 + $0x10] sm:$0xf]
    %v92 = vld [vmem:[#allocation5 + $0x14] sm:$0xf]
    %v93 = vld [vmem:[#allocation5 + $0x18] sm:$0xf]
    %v94 = vld [vmem:[#allocation5 + $0x1c] sm:$0xf]
    %v95 = vld [vmem:[#allocation5 + $0x20] sm:$0xf]
    %v96 = vld [vmem:[#allocation5 + $0x24] sm:$0xf]
    %v97 = vld [vmem:[#allocation5 + $0x28] sm:$0xf]
    %v98 = vld [vmem:[#allocation5 + $0x2c] sm:$0xf]
    %v99 = vld [vmem:[#allocation5 + $0x30] sm:$0xf]
    %v100 = vld [vmem:[#allocation5 + $0x34] sm:$0xf]
    %v101 = vld [vmem:[#allocation5 + $0x38] sm:$0xf]
    %v102 = vld [vmem:[#allocation5 + $0x3c] sm:$0xf]
    %v103 = vld [vmem:[%s2] sm:$0x1]
    %v105 = vlaneseq
    %v106 = vshrl.u32 %v105, 7
    %v107 = vsub.s32 0, %v106
    %v108 = vrot.slane %v103, %v107
    %v114 = vunpack.c.l.b16 %v83
    %v115 = vunpack.c.l.b16 %v84
    %v116 = vunpack.c.l.b16 %v85
    %v117 = vunpack.c.l.b16 %v86
    %v118 = vpack.c.b16 %v115, %v114
    %v119 = vpack.c.b16 %v117, %v116
    %v138 = vunpack.c.l.b16 %v87
    %v139 = vunpack.c.l.b16 %v88
    %v140 = vunpack.c.l.b16 %v89
    %v141 = vunpack.c.l.b16 %v90
    %v142 = vunpack.c.l.b16 %v91
    %v143 = vunpack.c.l.b16 %v92
    %v144 = vunpack.c.l.b16 %v93
    %v145 = vunpack.c.l.b16 %v94
    %v146 = vunpack.c.l.b16 %v95
    %v147 = vunpack.c.l.b16 %v96
    %v148 = vunpack.c.l.b16 %v97
    %v149 = vunpack.c.l.b16 %v98
    %v150 = vunpack.c.l.b16 %v99
    %v151 = vunpack.c.l.b16 %v100
    %v152 = vunpack.c.l.b16 %v101
    %v153 = vunpack.c.l.b16 %v102
    %v154 = vpack.c.b16 %v139, %v138
    %v155 = vpack.c.b16 %v141, %v140
    %v156 = vpack.c.b16 %v143, %v142
    %v157 = vpack.c.b16 %v145, %v144
    %v158 = vpack.c.b16 %v147, %v146
    %v159 = vpack.c.b16 %v149, %v148
    %v160 = vpack.c.b16 %v151, %v150
    %v161 = vpack.c.b16 %v153, %v152
    %170 = vmatprep.subr.bf16.mxu0 0
    %171 = vmatpush1.bf16.msra.mxu0 %v154
    %172 = vmatprep.subr.bf16.mxu0 0
    %173 = vmatpush1.bf16.msra.mxu0 %v155
    %174 = vmatprep.subr.bf16.mxu0 0
    %175 = vmatpush1.bf16.msra.mxu0 %v156
    %176 = vmatprep.subr.bf16.mxu0 0
    %177 = vmatpush1.bf16.msra.mxu0 %v157
    %178 = vmatprep.subr.bf16.mxu0 0
    %179 = vmatpush1.bf16.msra.mxu0 %v158
    %180 = vmatprep.subr.bf16.mxu0 0
    %181 = vmatpush1.bf16.msra.mxu0 %v159
    %182 = vmatprep.subr.bf16.mxu0 0
    %183 = vmatpush1.bf16.msra.mxu0 %v160
    %184 = vmatprep.subr.bf16.mxu0 0
    %185 = vmatpush1.bf16.msra.mxu0 %v161
    %186 = vmatprep.subr.bf16.mxu0 0
    %187 = vmatpush1.bf16.msra.mxu0 0
    %188 = vmatprep.subr.bf16.mxu0 0
    %189 = vmatpush1.bf16.msra.mxu0 0
    %190 = vmatprep.subr.bf16.mxu0 0
    %191 = vmatpush1.bf16.msra.mxu0 0
    %192 = vmatprep.subr.bf16.mxu0 0
    %193 = vmatpush1.bf16.msra.mxu0 0
    %194 = vmatprep.subr.bf16.mxu0 0
    %195 = vmatpush1.bf16.msra.mxu0 0
    %196 = vmatprep.subr.bf16.mxu0 0
    %197 = vmatpush1.bf16.msra.mxu0 0
    %198 = vmatprep.subr.bf16.mxu0 0
    %199 = vmatpush1.bf16.msra.mxu0 0
    %200 = vmatprep.subr.bf16.mxu0 0
    %201 = vmatpush1.bf16.msra.mxu0 0
    %202 = vmatprep.mubr.bf16.mxu0 0
    %203 = vmatmul.mubr.bf16.gmra.mrb[0].mxu0 %v118
    %v204 = vpop.f32.mrb[0].mxu0
    %v205 = vadd.f32 %v108, %v204
    %v206 = vpop.f32.mrb[0].mxu0
    %v207 = vpop.f32.mrb[0].mxu0
    %v208 = vadd.f32 %v108, %v207
    %v209 = vpop.f32.mrb[0].mxu0
    %210 = vmatprep.mubr.bf16.mxu0 0
    %211 = vmatmul.mubr.bf16.gmra.mrb[0].mxu0 %v119
    %v212 = vpop.f32.mrb[0].mxu0
    %v213 = vadd.f32 %v108, %v212
    %v214 = vpop.f32.mrb[0].mxu0
    %v215 = vpop.f32.mrb[0].mxu0
    %v216 = vadd.f32 %v108, %v215
    %v217 = vpop.f32.mrb[0].mxu0
    %218 = vdwg.mxu0
    %v219 = vlaneseq
    %v220 = vshrl.u32 %v219, 7
    %v221 = vadd.s32 %v220, 8
    %vm222 = vcmp.ge.s32.totalorder %v220, 1
    %vm223 = vcmp.ge.s32.totalorder %v221, 1
    %vm224 = vcmp.lt.s32.totalorder %v220, 16
    %vm225 = vcmp.lt.s32.totalorder %v221, 16
    %vm226 = vmand %vm222, %vm224
    %vm227 = vmand %vm223, %vm225
    %v228 = vsel %vm226, 1, 0
    %v229 = vsel %vm227, 1, 0
    %v230 = vcvt.s32.f32 %v228
    %v231 = vcvt.s32.f32 %v229
    %vm232 = vcmp.ge.s32.totalorder %v220, 0
    %vm233 = vcmp.ge.s32.totalorder %v221, 0
    %vm234 = vcmp.lt.s32.totalorder %v220, 15
    %vm235 = vcmp.lt.s32.totalorder %v221, 15
    %vm236 = vmand %vm232, %vm234
    %vm237 = vmand %vm233, %vm235
    %v238 = vsel %vm236, 1, 0
    %v239 = vsel %vm237, 1, 0
    %v240 = vcvt.s32.f32 %v238
    %v241 = vcvt.s32.f32 %v239
    %v242 = vpack.c.bf16 %v208, %v205
    %v243 = vpack.c.bf16 %v216, %v213
    %v244 = vld [vmem:[#allocation7] sm:$0xff]
    %v245 = vld [vmem:[#allocation7 + $0x8] sm:$0xf]
    %v246 = vld [vmem:[#allocation7 + $0xc] sm:$0xff]
    %v247 = vld [vmem:[#allocation7 + $0x14] sm:$0xf]
    %v248 = vld [vmem:[#allocation7 + $0x18] sm:$0xff]
    %v249 = vld [vmem:[#allocation7 + $0x20] sm:$0xf]
    %v250 = vld [vmem:[#allocation7 + $0x24] sm:$0xff]
    %v251 = vld [vmem:[#allocation7 + $0x2c] sm:$0xf]
    %v252 = vld [vmem:[#allocation7 + $0x30] sm:$0xff]
    %v253 = vld [vmem:[#allocation7 + $0x38] sm:$0xf]
    %v254 = vld [vmem:[#allocation7 + $0x3c] sm:$0xff]
    %v255 = vld [vmem:[#allocation7 + $0x44] sm:$0xf]
    %v256 = vld [vmem:[#allocation7 + $0x48] sm:$0xff]
    %v257 = vld [vmem:[#allocation7 + $0x50] sm:$0xf]
    %v258 = vld [vmem:[#allocation7 + $0x54] sm:$0xff]
    %v259 = vld [vmem:[#allocation7 + $0x5c] sm:$0xf]
    %v260 = vld [vmem:[#allocation7 + $0x60] sm:$0xff]
    %v261 = vld [vmem:[#allocation7 + $0x68] sm:$0xf]
    %v262 = vld [vmem:[#allocation7 + $0x6c] sm:$0xff]
    %v263 = vld [vmem:[#allocation7 + $0x74] sm:$0xf]
    %v264 = vld [vmem:[#allocation7 + $0x78] sm:$0xff]
    %v265 = vld [vmem:[#allocation7 + $0x80] sm:$0xf]
    %v266 = vld [vmem:[#allocation7 + $0x84] sm:$0xff]
    %v267 = vld [vmem:[#allocation7 + $0x8c] sm:$0xf]
    %v268 = vld [vmem:[#allocation7 + $0x90] sm:$0xff]
    %v269 = vld [vmem:[#allocation7 + $0x98] sm:$0xf]
    %v270 = vld [vmem:[#allocation7 + $0x9c] sm:$0xff]
    %v271 = vld [vmem:[#allocation7 + $0xa4] sm:$0xf]
    %v272 = vld [vmem:[#allocation7 + $0xa8] sm:$0xff]
    %v273 = vld [vmem:[#allocation7 + $0xb0] sm:$0xf]
    %v274 = vld [vmem:[#allocation7 + $0xb4] sm:$0xff]
    %v275 = vld [vmem:[#allocation7 + $0xbc] sm:$0xf]
    %v308 = vunpack.c.l.b16 %v244
    %v309 = vunpack.c.h.b16 %v244
    %v310 = vunpack.c.l.b16 %v245
    %v311 = vunpack.c.l.b16 %v246
    %v312 = vunpack.c.h.b16 %v246
    %v313 = vunpack.c.l.b16 %v247
    %v314 = vunpack.c.l.b16 %v248
    %v315 = vunpack.c.h.b16 %v248
    %v316 = vunpack.c.l.b16 %v249
    %v317 = vunpack.c.l.b16 %v250
    %v318 = vunpack.c.h.b16 %v250
    %v319 = vunpack.c.l.b16 %v251
    %v320 = vunpack.c.l.b16 %v252
    %v321 = vunpack.c.h.b16 %v252
    %v322 = vunpack.c.l.b16 %v253
    %v323 = vunpack.c.l.b16 %v254
    %v324 = vunpack.c.h.b16 %v254
    %v325 = vunpack.c.l.b16 %v255
    %v326 = vunpack.c.l.b16 %v256
    %v327 = vunpack.c.h.b16 %v256
    %v328 = vunpack.c.l.b16 %v257
    %v329 = vunpack.c.l.b16 %v258
    %v330 = vunpack.c.h.b16 %v258
    %v331 = vunpack.c.l.b16 %v259
    %v332 = vunpack.c.l.b16 %v260
    %v333 = vunpack.c.h.b16 %v260
    %v334 = vunpack.c.l.b16 %v261
    %v335 = vunpack.c.l.b16 %v262
    %v336 = vunpack.c.h.b16 %v262
    %v337 = vunpack.c.l.b16 %v263
    %v338 = vunpack.c.l.b16 %v264
    %v339 = vunpack.c.h.b16 %v264
    %v340 = vunpack.c.l.b16 %v265
    %v341 = vunpack.c.l.b16 %v266
    %v342 = vunpack.c.h.b16 %v266
    %v343 = vunpack.c.l.b16 %v267
    %v344 = vunpack.c.l.b16 %v268
    %v345 = vunpack.c.h.b16 %v268
    %v346 = vunpack.c.l.b16 %v269
    %v347 = vunpack.c.l.b16 %v270
    %v348 = vunpack.c.h.b16 %v270
    %v349 = vunpack.c.l.b16 %v271
    %v350 = vunpack.c.l.b16 %v272
    %v351 = vunpack.c.h.b16 %v272
    %v352 = vunpack.c.l.b16 %v273
    %v353 = vunpack.c.l.b16 %v274
    %v354 = vunpack.c.h.b16 %v274
    %v355 = vunpack.c.l.b16 %v275
    %v356 = vpack.c.b16 %v311, %v308
    %v357 = vpack.c.b16 %v312, %v309
    %v358 = vpack.c.b16 %v313, %v310
    %v359 = vpack.c.b16 %v317, %v314
    %v360 = vpack.c.b16 %v318, %v315
    %v361 = vpack.c.b16 %v319, %v316
    %v362 = vpack.c.b16 %v323, %v320
    %v363 = vpack.c.b16 %v324, %v321
    %v364 = vpack.c.b16 %v325, %v322
    %v365 = vpack.c.b16 %v329, %v326
    %v366 = vpack.c.b16 %v330, %v327
    %v367 = vpack.c.b16 %v331, %v328
    %v368 = vpack.c.b16 %v335, %v332
    %v369 = vpack.c.b16 %v336, %v333
    %v370 = vpack.c.b16 %v337, %v334
    %v371 = vpack.c.b16 %v341, %v338
    %v372 = vpack.c.b16 %v342, %v339
    %v373 = vpack.c.b16 %v343, %v340
    %v374 = vpack.c.b16 %v347, %v344
    %v375 = vpack.c.b16 %v348, %v345
    %v376 = vpack.c.b16 %v349, %v346
    %v377 = vpack.c.b16 %v353, %v350
    %v378 = vpack.c.b16 %v354, %v351
    %v379 = vpack.c.b16 %v355, %v352
    %404 = vmatprep.subr.bf16.mxu0 %v357
    %405 = vmatpush1.bf16.msra.mxu0 %v356
    %406 = vmatprep.subr.bf16.mxu0 %v360
    %407 = vmatpush1.bf16.msra.mxu0 %v359
    %408 = vmatprep.subr.bf16.mxu0 %v363
    %409 = vmatpush1.bf16.msra.mxu0 %v362
    %410 = vmatprep.subr.bf16.mxu0 %v366
    %411 = vmatpush1.bf16.msra.mxu0 %v365
    %412 = vmatprep.subr.bf16.mxu0 %v369
    %413 = vmatpush1.bf16.msra.mxu0 %v368
    %414 = vmatprep.subr.bf16.mxu0 %v372
    %415 = vmatpush1.bf16.msra.mxu0 %v371
    %416 = vmatprep.subr.bf16.mxu0 %v375
    %417 = vmatpush1.bf16.msra.mxu0 %v374
    %418 = vmatprep.subr.bf16.mxu0 %v378
    %419 = vmatpush1.bf16.msra.mxu0 %v377
    %420 = vmatprep.subr.bf16.mxu0 0
    %421 = vmatpush1.bf16.msra.mxu0 0
    %422 = vmatprep.subr.bf16.mxu0 0
    %423 = vmatpush1.bf16.msra.mxu0 0
    %424 = vmatprep.subr.bf16.mxu0 0
    %425 = vmatpush1.bf16.msra.mxu0 0
    %426 = vmatprep.subr.bf16.mxu0 0
    %427 = vmatpush1.bf16.msra.mxu0 0
    %428 = vmatprep.subr.bf16.mxu0 0
    %429 = vmatpush1.bf16.msra.mxu0 0
    %430 = vmatprep.subr.bf16.mxu0 0
    %431 = vmatpush1.bf16.msra.mxu0 0
    %432 = vmatprep.subr.bf16.mxu0 0
    %433 = vmatpush1.bf16.msra.mxu0 0
    %434 = vmatprep.subr.bf16.mxu0 0
    %435 = vmatpush1.bf16.msra.mxu0 0
    %436 = vmatprep.mubr.bf16.mxu0 0
    %437 = vmatmul.mubr.bf16.gmra.mrb[0].mxu0 %v242
    %v438 = vpop.f32.mrb[0].mxu0
    %v439 = vadd.f32 0.0, %v438
    %v440 = vpop.f32.mrb[0].mxu0
    %v441 = vadd.f32 0.0, %v440
    %v442 = vpop.f32.mrb[0].mxu0
    %v443 = vadd.f32 0.0, %v442
    %v444 = vpop.f32.mrb[0].mxu0
    %v445 = vadd.f32 0.0, %v444
    %446 = vmatprep.mubr.bf16.mxu0 0
    %447 = vmatmul.mubr.bf16.gmra.mrb[0].mxu0 %v243
    %v448 = vpop.f32.mrb[0].mxu0
    %v449 = vadd.f32 0.0, %v448
    %v450 = vpop.f32.mrb[0].mxu0
    %v451 = vadd.f32 0.0, %v450
    %v452 = vpop.f32.mrb[0].mxu0
    %v453 = vadd.f32 0.0, %v452
    %v454 = vpop.f32.mrb[0].mxu0
    %v455 = vadd.f32 0.0, %v454
    %456 = vdwg.mxu0
    %457 = vmatprep.subr.bf16.mxu0 0
    %458 = vmatpush1.bf16.msra.mxu0 %v358
    %459 = vmatprep.subr.bf16.mxu0 0
    %460 = vmatpush1.bf16.msra.mxu0 %v361
    %461 = vmatprep.subr.bf16.mxu0 0
    %462 = vmatpush1.bf16.msra.mxu0 %v364
    %463 = vmatprep.subr.bf16.mxu0 0
    %464 = vmatpush1.bf16.msra.mxu0 %v367
    %465 = vmatprep.subr.bf16.mxu0 0
    %466 = vmatpush1.bf16.msra.mxu0 %v370
    %467 = vmatprep.subr.bf16.mxu0 0
    %468 = vmatpush1.bf16.msra.mxu0 %v373
    %469 = vmatprep.subr.bf16.mxu0 0
    %470 = vmatpush1.bf16.msra.mxu0 %v376
    %471 = vmatprep.subr.bf16.mxu0 0
    %472 = vmatpush1.bf16.msra.mxu0 %v379
    %473 = vmatprep.subr.bf16.mxu0 0
    %474 = vmatpush1.bf16.msra.mxu0 0
    %475 = vmatprep.subr.bf16.mxu0 0
    %476 = vmatpush1.bf16.msra.mxu0 0
    %477 = vmatprep.subr.bf16.mxu0 0
    %478 = vmatpush1.bf16.msra.mxu0 0
    %479 = vmatprep.subr.bf16.mxu0 0
    %480 = vmatpush1.bf16.msra.mxu0 0
    %481 = vmatprep.subr.bf16.mxu0 0
    %482 = vmatpush1.bf16.msra.mxu0 0
    %483 = vmatprep.subr.bf16.mxu0 0
    %484 = vmatpush1.bf16.msra.mxu0 0
    %485 = vmatprep.subr.bf16.mxu0 0
    %486 = vmatpush1.bf16.msra.mxu0 0
    %487 = vmatprep.subr.bf16.mxu0 0
    %488 = vmatpush1.bf16.msra.mxu0 0
    %489 = vmatprep.mubr.bf16.mxu0 0
    %490 = vmatmul.mubr.bf16.gmra.mrb[0].mxu0 %v242
    %v491 = vpop.f32.mrb[0].mxu0
    %v492 = vadd.f32 0.0, %v491
    %v493 = vpop.f32.mrb[0].mxu0
    %v494 = vpop.f32.mrb[0].mxu0
    %v495 = vadd.f32 0.0, %v494
    %v496 = vpop.f32.mrb[0].mxu0
    %497 = vmatprep.mubr.bf16.mxu0 0
    %498 = vmatmul.mubr.bf16.gmra.mrb[0].mxu0 %v243
    %v499 = vpop.f32.mrb[0].mxu0
    %v500 = vadd.f32 0.0, %v499
    %v501 = vpop.f32.mrb[0].mxu0
    %v502 = vpop.f32.mrb[0].mxu0
    %v503 = vadd.f32 0.0, %v502
    %v504 = vpop.f32.mrb[0].mxu0
    %505 = vdwg.mxu0
    %v506 = vrot.slane %v439, 7
    %v507 = vrot.slane %v443, 7
    %v508 = vrot.slane %v449, 7
    %v509 = vrot.slane %v453, 7
    %vm510 = vcmp.lt.s32.totalorder %v220, 1
    %v511 = vsel %vm510, %v508, %v509
    %v512 = vsel %vm510, %v507, %v508
    %v513 = vsel %vm510, %v506, %v507
    %v514 = vsel %vm510, %v509, %v506
    %v515 = vmul.f32 %v514, %v230
    %v516 = vmul.f32 %v513, %v231
    %v517 = vmul.f32 %v512, %v230
    %v518 = vmul.f32 %v511, %v231
    %v519 = vadd.f32 %v441, %v515
    %v520 = vadd.f32 %v445, %v516
    %v521 = vadd.f32 %v451, %v517
    %v522 = vadd.f32 %v455, %v518
    %v523 = vrot.slane %v492, 1
    %v524 = vrot.slane %v495, 1
    %v525 = vrot.slane %v500, 1
    %v526 = vrot.slane %v503, 1
    %vm527 = vcmp.lt.s32.totalorder %v220, 7
    %v528 = vsel %vm527, %v525, %v526
    %v529 = vsel %vm527, %v524, %v525
    %v530 = vsel %vm527, %v523, %v524
    %v531 = vsel %vm527, %v526, %v523
    %v532 = vmul.f32 %v530, %v240
    %v533 = vmul.f32 %v529, %v241
    %v534 = vmul.f32 %v528, %v240
    %v535 = vmul.f32 %v531, %v241
    %v536 = vadd.f32 %v519, %v532
    %v537 = vadd.f32 %v520, %v533
    %v538 = vadd.f32 %v521, %v534
    %v539 = vadd.f32 %v522, %v535
    %v540 = vld [vmem:[%s4] sm:$0x1]
    %v542 = vlaneseq
    %v543 = vshrl.u32 %v542, 7
    %v544 = vsub.s32 0, %v543
    %v545 = vrot.slane %v540, %v544
    %v547 = vadd.f32 %v536, %v545
    %v548 = vadd.f32 %v537, %v545
    %v549 = vadd.f32 %v538, %v545
    %v550 = vadd.f32 %v539, %v545
    %v551 = vmax.f32 %v547, 0.0
    %v552 = vmax.f32 %v548, 0.0
    %v553 = vmax.f32 %v549, 0.0
    %v554 = vmax.f32 %v550, 0.0
    %v555 = vadd.f32 %v205, %v551
    %v556 = vadd.f32 %v208, %v552
    %v557 = vadd.f32 %v213, %v553
    %v558 = vadd.f32 %v216, %v554
    %v559 = vpack.c.bf16 %v556, %v555
    %v560 = vpack.c.bf16 %v558, %v557
    %s561 = scalar_lea.vmem [#allocation7], 192
    %v562 = vld [vmem:[%s561] sm:$0xff]
    %v563 = vld [vmem:[%s561 + $0x8] sm:$0xf]
    %v564 = vld [vmem:[%s561 + $0xc] sm:$0xff]
    %v565 = vld [vmem:[%s561 + $0x14] sm:$0xf]
    %v566 = vld [vmem:[%s561 + $0x18] sm:$0xff]
    %v567 = vld [vmem:[%s561 + $0x20] sm:$0xf]
    %v568 = vld [vmem:[%s561 + $0x24] sm:$0xff]
    %v569 = vld [vmem:[%s561 + $0x2c] sm:$0xf]
    %v570 = vld [vmem:[%s561 + $0x30] sm:$0xff]
    %v571 = vld [vmem:[%s561 + $0x38] sm:$0xf]
    %v572 = vld [vmem:[%s561 + $0x3c] sm:$0xff]
    %v573 = vld [vmem:[%s561 + $0x44] sm:$0xf]
    %v574 = vld [vmem:[%s561 + $0x48] sm:$0xff]
    %v575 = vld [vmem:[%s561 + $0x50] sm:$0xf]
    %v576 = vld [vmem:[%s561 + $0x54] sm:$0xff]
    %v577 = vld [vmem:[%s561 + $0x5c] sm:$0xf]
    %v578 = vld [vmem:[%s561 + $0x60] sm:$0xff]
    %v579 = vld [vmem:[%s561 + $0x68] sm:$0xf]
    %v580 = vld [vmem:[%s561 + $0x6c] sm:$0xff]
    %v581 = vld [vmem:[%s561 + $0x74] sm:$0xf]
    %v582 = vld [vmem:[%s561 + $0x78] sm:$0xff]
    %v583 = vld [vmem:[%s561 + $0x80] sm:$0xf]
    %v584 = vld [vmem:[%s561 + $0x84] sm:$0xff]
    %v585 = vld [vmem:[%s561 + $0x8c] sm:$0xf]
    %v586 = vld [vmem:[%s561 + $0x90] sm:$0xff]
    %v587 = vld [vmem:[%s561 + $0x98] sm:$0xf]
    %v588 = vld [vmem:[%s561 + $0x9c] sm:$0xff]
    %v589 = vld [vmem:[%s561 + $0xa4] sm:$0xf]
    %v590 = vld [vmem:[%s561 + $0xa8] sm:$0xff]
    %v591 = vld [vmem:[%s561 + $0xb0] sm:$0xf]
    %v592 = vld [vmem:[%s561 + $0xb4] sm:$0xff]
    %v593 = vld [vmem:[%s561 + $0xbc] sm:$0xf]
    %v626 = vunpack.c.l.b16 %v562
    %v627 = vunpack.c.h.b16 %v562
    %v628 = vunpack.c.l.b16 %v563
    %v629 = vunpack.c.l.b16 %v564
    %v630 = vunpack.c.h.b16 %v564
    %v631 = vunpack.c.l.b16 %v565
    %v632 = vunpack.c.l.b16 %v566
    %v633 = vunpack.c.h.b16 %v566
    %v634 = vunpack.c.l.b16 %v567
    %v635 = vunpack.c.l.b16 %v568
    %v636 = vunpack.c.h.b16 %v568
    %v637 = vunpack.c.l.b16 %v569
    %v638 = vunpack.c.l.b16 %v570
    %v639 = vunpack.c.h.b16 %v570
    %v640 = vunpack.c.l.b16 %v571
    %v641 = vunpack.c.l.b16 %v572
    %v642 = vunpack.c.h.b16 %v572
    %v643 = vunpack.c.l.b16 %v573
    %v644 = vunpack.c.l.b16 %v574
    %v645 = vunpack.c.h.b16 %v574
    %v646 = vunpack.c.l.b16 %v575
    %v647 = vunpack.c.l.b16 %v576
    %v648 = vunpack.c.h.b16 %v576
    %v649 = vunpack.c.l.b16 %v577
    %v650 = vunpack.c.l.b16 %v578
    %v651 = vunpack.c.h.b16 %v578
    %v652 = vunpack.c.l.b16 %v579
    %v653 = vunpack.c.l.b16 %v580
    %v654 = vunpack.c.h.b16 %v580
    %v655 = vunpack.c.l.b16 %v581
    %v656 = vunpack.c.l.b16 %v582
    %v657 = vunpack.c.h.b16 %v582
    %v658 = vunpack.c.l.b16 %v583
    %v659 = vunpack.c.l.b16 %v584
    %v660 = vunpack.c.h.b16 %v584
    %v661 = vunpack.c.l.b16 %v585
    %v662 = vunpack.c.l.b16 %v586
    %v663 = vunpack.c.h.b16 %v586
    %v664 = vunpack.c.l.b16 %v587
    %v665 = vunpack.c.l.b16 %v588
    %v666 = vunpack.c.h.b16 %v588
    %v667 = vunpack.c.l.b16 %v589
    %v668 = vunpack.c.l.b16 %v590
    %v669 = vunpack.c.h.b16 %v590
    %v670 = vunpack.c.l.b16 %v591
    %v671 = vunpack.c.l.b16 %v592
    %v672 = vunpack.c.h.b16 %v592
    %v673 = vunpack.c.l.b16 %v593
    %v674 = vpack.c.b16 %v629, %v626
    %v675 = vpack.c.b16 %v630, %v627
    %v676 = vpack.c.b16 %v631, %v628
    %v677 = vpack.c.b16 %v635, %v632
    %v678 = vpack.c.b16 %v636, %v633
    %v679 = vpack.c.b16 %v637, %v634
    %v680 = vpack.c.b16 %v641, %v638
    %v681 = vpack.c.b16 %v642, %v639
    %v682 = vpack.c.b16 %v643, %v640
    %v683 = vpack.c.b16 %v647, %v644
    %v684 = vpack.c.b16 %v648, %v645
    %v685 = vpack.c.b16 %v649, %v646
    %v686 = vpack.c.b16 %v653, %v650
    %v687 = vpack.c.b16 %v654, %v651
    %v688 = vpack.c.b16 %v655, %v652
    %v689 = vpack.c.b16 %v659, %v656
    %v690 = vpack.c.b16 %v660, %v657
    %v691 = vpack.c.b16 %v661, %v658
    %v692 = vpack.c.b16 %v665, %v662
    %v693 = vpack.c.b16 %v666, %v663
    %v694 = vpack.c.b16 %v667, %v664
    %v695 = vpack.c.b16 %v671, %v668
    %v696 = vpack.c.b16 %v672, %v669
    %v697 = vpack.c.b16 %v673, %v670
    %722 = vmatprep.subr.bf16.mxu0 %v675
    %723 = vmatpush1.bf16.msra.mxu0 %v674
    %724 = vmatprep.subr.bf16.mxu0 %v678
    %725 = vmatpush1.bf16.msra.mxu0 %v677
    %726 = vmatprep.subr.bf16.mxu0 %v681
    %727 = vmatpush1.bf16.msra.mxu0 %v680
    %728 = vmatprep.subr.bf16.mxu0 %v684
    %729 = vmatpush1.bf16.msra.mxu0 %v683
    %730 = vmatprep.subr.bf16.mxu0 %v687
    %731 = vmatpush1.bf16.msra.mxu0 %v686
    %732 = vmatprep.subr.bf16.mxu0 %v690
    %733 = vmatpush1.bf16.msra.mxu0 %v689
    %734 = vmatprep.subr.bf16.mxu0 %v693
    %735 = vmatpush1.bf16.msra.mxu0 %v692
    %736 = vmatprep.subr.bf16.mxu0 %v696
    %737 = vmatpush1.bf16.msra.mxu0 %v695
    %738 = vmatprep.subr.bf16.mxu0 0
    %739 = vmatpush1.bf16.msra.mxu0 0
    %740 = vmatprep.subr.bf16.mxu0 0
    %741 = vmatpush1.bf16.msra.mxu0 0
    %742 = vmatprep.subr.bf16.mxu0 0
    %743 = vmatpush1.bf16.msra.mxu0 0
    %744 = vmatprep.subr.bf16.mxu0 0
    %745 = vmatpush1.bf16.msra.mxu0 0
    %746 = vmatprep.subr.bf16.mxu0 0
    %747 = vmatpush1.bf16.msra.mxu0 0
    %748 = vmatprep.subr.bf16.mxu0 0
    %749 = vmatpush1.bf16.msra.mxu0 0
    %750 = vmatprep.subr.bf16.mxu0 0
    %751 = vmatpush1.bf16.msra.mxu0 0
    %752 = vmatprep.subr.bf16.mxu0 0
    %753 = vmatpush1.bf16.msra.mxu0 0
    %754 = vmatprep.mubr.bf16.mxu0 0
    %755 = vmatmul.mubr.bf16.gmra.mrb[0].mxu0 %v559
    %v756 = vpop.f32.mrb[0].mxu0
    %v757 = vadd.f32 0.0, %v756
    %v758 = vpop.f32.mrb[0].mxu0
    %v759 = vadd.f32 0.0, %v758
    %v760 = vpop.f32.mrb[0].mxu0
    %v761 = vadd.f32 0.0, %v760
    %v762 = vpop.f32.mrb[0].mxu0
    %v763 = vadd.f32 0.0, %v762
    %764 = vmatprep.mubr.bf16.mxu0 0
    %765 = vmatmul.mubr.bf16.gmra.mrb[0].mxu0 %v560
    %v766 = vpop.f32.mrb[0].mxu0
    %v767 = vadd.f32 0.0, %v766
    %v768 = vpop.f32.mrb[0].mxu0
    %v769 = vadd.f32 0.0, %v768
    %v770 = vpop.f32.mrb[0].mxu0
    %v771 = vadd.f32 0.0, %v770
    %v772 = vpop.f32.mrb[0].mxu0
    %v773 = vadd.f32 0.0, %v772
    %774 = vdwg.mxu0
    %775 = vmatprep.subr.bf16.mxu0 0
    %776 = vmatpush1.bf16.msra.mxu0 %v676
    %777 = vmatprep.subr.bf16.mxu0 0
    %778 = vmatpush1.bf16.msra.mxu0 %v679
    %779 = vmatprep.subr.bf16.mxu0 0
    %780 = vmatpush1.bf16.msra.mxu0 %v682
    %781 = vmatprep.subr.bf16.mxu0 0
    %782 = vmatpush1.bf16.msra.mxu0 %v685
    %783 = vmatprep.subr.bf16.mxu0 0
    %784 = vmatpush1.bf16.msra.mxu0 %v688
    %785 = vmatprep.subr.bf16.mxu0 0
    %786 = vmatpush1.bf16.msra.mxu0 %v691
    %787 = vmatprep.subr.bf16.mxu0 0
    %788 = vmatpush1.bf16.msra.mxu0 %v694
    %789 = vmatprep.subr.bf16.mxu0 0
    %790 = vmatpush1.bf16.msra.mxu0 %v697
    %791 = vmatprep.subr.bf16.mxu0 0
    %792 = vmatpush1.bf16.msra.mxu0 0
    %793 = vmatprep.subr.bf16.mxu0 0
    %794 = vmatpush1.bf16.msra.mxu0 0
    %795 = vmatprep.subr.bf16.mxu0 0
    %796 = vmatpush1.bf16.msra.mxu0 0
    %797 = vmatprep.subr.bf16.mxu0 0
    %798 = vmatpush1.bf16.msra.mxu0 0
    %799 = vmatprep.subr.bf16.mxu0 0
    %800 = vmatpush1.bf16.msra.mxu0 0
    %801 = vmatprep.subr.bf16.mxu0 0
    %802 = vmatpush1.bf16.msra.mxu0 0
    %803 = vmatprep.subr.bf16.mxu0 0
    %804 = vmatpush1.bf16.msra.mxu0 0
    %805 = vmatprep.subr.bf16.mxu0 0
    %806 = vmatpush1.bf16.msra.mxu0 0
    %807 = vmatprep.mubr.bf16.mxu0 0
    %808 = vmatmul.mubr.bf16.gmra.mrb[0].mxu0 %v559
    %v809 = vpop.f32.mrb[0].mxu0
    %v810 = vadd.f32 0.0, %v809
    %v811 = vpop.f32.mrb[0].mxu0
    %v812 = vpop.f32.mrb[0].mxu0
    %v813 = vadd.f32 0.0, %v812
    %v814 = vpop.f32.mrb[0].mxu0
    %815 = vmatprep.mubr.bf16.mxu0 0
    %816 = vmatmul.mubr.bf16.gmra.mrb[0].mxu0 %v560
    %v817 = vpop.f32.mrb[0].mxu0
    %v818 = vadd.f32 0.0, %v817
    %v819 = vpop.f32.mrb[0].mxu0
    %v820 = vpop.f32.mrb[0].mxu0
    %v821 = vadd.f32 0.0, %v820
    %v822 = vpop.f32.mrb[0].mxu0
    %823 = vdwg.mxu0
    %v824 = vrot.slane %v757, 7
    %v825 = vrot.slane %v761, 7
    %v826 = vrot.slane %v767, 7
    %v827 = vrot.slane %v771, 7
    %v828 = vsel %vm510, %v826, %v827
    %v829 = vsel %vm510, %v825, %v826
    %v830 = vsel %vm510, %v824, %v825
    %v831 = vsel %vm510, %v827, %v824
    %v832 = vmul.f32 %v831, %v230
    %v833 = vmul.f32 %v830, %v231
    %v834 = vmul.f32 %v829, %v230
    %v835 = vmul.f32 %v828, %v231
    %v836 = vadd.f32 %v759, %v832
    %v837 = vadd.f32 %v763, %v833
    %v838 = vadd.f32 %v769, %v834
    %v839 = vadd.f32 %v773, %v835
    %v840 = vrot.slane %v810, 1
    %v841 = vrot.slane %v813, 1
    %v842 = vrot.slane %v818, 1
    %v843 = vrot.slane %v821, 1
    %v844 = vsel %vm527, %v842, %v843
    %v845 = vsel %vm527, %v841, %v842
    %v846 = vsel %vm527, %v840, %v841
    %v847 = vsel %vm527, %v843, %v840
    %v848 = vmul.f32 %v846, %v240
    %v849 = vmul.f32 %v845, %v241
    %v850 = vmul.f32 %v844, %v240
    %v851 = vmul.f32 %v847, %v241
    %v852 = vadd.f32 %v836, %v848
    %v853 = vadd.f32 %v837, %v849
    %v854 = vadd.f32 %v838, %v850
    %v855 = vadd.f32 %v839, %v851
    %s856 = scalar_lea.vmem %s4, 1
    %v857 = vld [vmem:[%s856] sm:$0x1]
    %v859 = vlaneseq
    %v860 = vshrl.u32 %v859, 7
    %v861 = vsub.s32 0, %v860
    %v862 = vrot.slane %v857, %v861
    %v864 = vadd.f32 %v852, %v862
    %v865 = vadd.f32 %v853, %v862
    %v866 = vadd.f32 %v854, %v862
    %v867 = vadd.f32 %v855, %v862
    %v868 = vmax.f32 %v864, 0.0
    %v869 = vmax.f32 %v865, 0.0
    %v870 = vmax.f32 %v866, 0.0
    %v871 = vmax.f32 %v867, 0.0
    %v872 = vadd.f32 %v555, %v868
    %v873 = vadd.f32 %v556, %v869
    %v874 = vadd.f32 %v557, %v870
    %v875 = vadd.f32 %v558, %v871
    %v876 = vpack.c.bf16 %v873, %v872
    %v877 = vpack.c.bf16 %v875, %v874
    %s878 = scalar_lea.vmem [#allocation7], 384
    %v879 = vld [vmem:[%s878] sm:$0xff]
    %v880 = vld [vmem:[%s878 + $0x8] sm:$0xf]
    %v881 = vld [vmem:[%s878 + $0xc] sm:$0xff]
    %v882 = vld [vmem:[%s878 + $0x14] sm:$0xf]
    %v883 = vld [vmem:[%s878 + $0x18] sm:$0xff]
    %v884 = vld [vmem:[%s878 + $0x20] sm:$0xf]
    %v885 = vld [vmem:[%s878 + $0x24] sm:$0xff]
    %v886 = vld [vmem:[%s878 + $0x2c] sm:$0xf]
    %v887 = vld [vmem:[%s878 + $0x30] sm:$0xff]
    %v888 = vld [vmem:[%s878 + $0x38] sm:$0xf]
    %v889 = vld [vmem:[%s878 + $0x3c] sm:$0xff]
    %v890 = vld [vmem:[%s878 + $0x44] sm:$0xf]
    %v891 = vld [vmem:[%s878 + $0x48] sm:$0xff]
    %v892 = vld [vmem:[%s878 + $0x50] sm:$0xf]
    %v893 = vld [vmem:[%s878 + $0x54] sm:$0xff]
    %v894 = vld [vmem:[%s878 + $0x5c] sm:$0xf]
    %v895 = vld [vmem:[%s878 + $0x60] sm:$0xff]
    %v896 = vld [vmem:[%s878 + $0x68] sm:$0xf]
    %v897 = vld [vmem:[%s878 + $0x6c] sm:$0xff]
    %v898 = vld [vmem:[%s878 + $0x74] sm:$0xf]
    %v899 = vld [vmem:[%s878 + $0x78] sm:$0xff]
    %v900 = vld [vmem:[%s878 + $0x80] sm:$0xf]
    %v901 = vld [vmem:[%s878 + $0x84] sm:$0xff]
    %v902 = vld [vmem:[%s878 + $0x8c] sm:$0xf]
    %v903 = vld [vmem:[%s878 + $0x90] sm:$0xff]
    %v904 = vld [vmem:[%s878 + $0x98] sm:$0xf]
    %v905 = vld [vmem:[%s878 + $0x9c] sm:$0xff]
    %v906 = vld [vmem:[%s878 + $0xa4] sm:$0xf]
    %v907 = vld [vmem:[%s878 + $0xa8] sm:$0xff]
    %v908 = vld [vmem:[%s878 + $0xb0] sm:$0xf]
    %v909 = vld [vmem:[%s878 + $0xb4] sm:$0xff]
    %v910 = vld [vmem:[%s878 + $0xbc] sm:$0xf]
    %v943 = vunpack.c.l.b16 %v879
    %v944 = vunpack.c.h.b16 %v879
    %v945 = vunpack.c.l.b16 %v880
    %v946 = vunpack.c.l.b16 %v881
    %v947 = vunpack.c.h.b16 %v881
    %v948 = vunpack.c.l.b16 %v882
    %v949 = vunpack.c.l.b16 %v883
    %v950 = vunpack.c.h.b16 %v883
    %v951 = vunpack.c.l.b16 %v884
    %v952 = vunpack.c.l.b16 %v885
    %v953 = vunpack.c.h.b16 %v885
    %v954 = vunpack.c.l.b16 %v886
    %v955 = vunpack.c.l.b16 %v887
    %v956 = vunpack.c.h.b16 %v887
    %v957 = vunpack.c.l.b16 %v888
    %v958 = vunpack.c.l.b16 %v889
    %v959 = vunpack.c.h.b16 %v889
    %v960 = vunpack.c.l.b16 %v890
    %v961 = vunpack.c.l.b16 %v891
    %v962 = vunpack.c.h.b16 %v891
    %v963 = vunpack.c.l.b16 %v892
    %v964 = vunpack.c.l.b16 %v893
    %v965 = vunpack.c.h.b16 %v893
    %v966 = vunpack.c.l.b16 %v894
    %v967 = vunpack.c.l.b16 %v895
    %v968 = vunpack.c.h.b16 %v895
    %v969 = vunpack.c.l.b16 %v896
    %v970 = vunpack.c.l.b16 %v897
    %v971 = vunpack.c.h.b16 %v897
    %v972 = vunpack.c.l.b16 %v898
    %v973 = vunpack.c.l.b16 %v899
    %v974 = vunpack.c.h.b16 %v899
    %v975 = vunpack.c.l.b16 %v900
    %v976 = vunpack.c.l.b16 %v901
    %v977 = vunpack.c.h.b16 %v901
    %v978 = vunpack.c.l.b16 %v902
    %v979 = vunpack.c.l.b16 %v903
    %v980 = vunpack.c.h.b16 %v903
    %v981 = vunpack.c.l.b16 %v904
    %v982 = vunpack.c.l.b16 %v905
    %v983 = vunpack.c.h.b16 %v905
    %v984 = vunpack.c.l.b16 %v906
    %v985 = vunpack.c.l.b16 %v907
    %v986 = vunpack.c.h.b16 %v907
    %v987 = vunpack.c.l.b16 %v908
    %v988 = vunpack.c.l.b16 %v909
    %v989 = vunpack.c.h.b16 %v909
    %v990 = vunpack.c.l.b16 %v910
    %v991 = vpack.c.b16 %v946, %v943
    %v992 = vpack.c.b16 %v947, %v944
    %v993 = vpack.c.b16 %v948, %v945
    %v994 = vpack.c.b16 %v952, %v949
    %v995 = vpack.c.b16 %v953, %v950
    %v996 = vpack.c.b16 %v954, %v951
    %v997 = vpack.c.b16 %v958, %v955
    %v998 = vpack.c.b16 %v959, %v956
    %v999 = vpack.c.b16 %v960, %v957
    %v1000 = vpack.c.b16 %v964, %v961
    %v1001 = vpack.c.b16 %v965, %v962
    %v1002 = vpack.c.b16 %v966, %v963
    %v1003 = vpack.c.b16 %v970, %v967
    %v1004 = vpack.c.b16 %v971, %v968
    %v1005 = vpack.c.b16 %v972, %v969
    %v1006 = vpack.c.b16 %v976, %v973
    %v1007 = vpack.c.b16 %v977, %v974
    %v1008 = vpack.c.b16 %v978, %v975
    %v1009 = vpack.c.b16 %v982, %v979
    %v1010 = vpack.c.b16 %v983, %v980
    %v1011 = vpack.c.b16 %v984, %v981
    %v1012 = vpack.c.b16 %v988, %v985
    %v1013 = vpack.c.b16 %v989, %v986
    %v1014 = vpack.c.b16 %v990, %v987
    %1039 = vmatprep.subr.bf16.mxu0 %v992
    %1040 = vmatpush1.bf16.msra.mxu0 %v991
    %1041 = vmatprep.subr.bf16.mxu0 %v995
    %1042 = vmatpush1.bf16.msra.mxu0 %v994
    %1043 = vmatprep.subr.bf16.mxu0 %v998
    %1044 = vmatpush1.bf16.msra.mxu0 %v997
    %1045 = vmatprep.subr.bf16.mxu0 %v1001
    %1046 = vmatpush1.bf16.msra.mxu0 %v1000
    %1047 = vmatprep.subr.bf16.mxu0 %v1004
    %1048 = vmatpush1.bf16.msra.mxu0 %v1003
    %1049 = vmatprep.subr.bf16.mxu0 %v1007
    %1050 = vmatpush1.bf16.msra.mxu0 %v1006
    %1051 = vmatprep.subr.bf16.mxu0 %v1010
    %1052 = vmatpush1.bf16.msra.mxu0 %v1009
    %1053 = vmatprep.subr.bf16.mxu0 %v1013
    %1054 = vmatpush1.bf16.msra.mxu0 %v1012
    %1055 = vmatprep.subr.bf16.mxu0 0
    %1056 = vmatpush1.bf16.msra.mxu0 0
    %1057 = vmatprep.subr.bf16.mxu0 0
    %1058 = vmatpush1.bf16.msra.mxu0 0
    %1059 = vmatprep.subr.bf16.mxu0 0
    %1060 = vmatpush1.bf16.msra.mxu0 0
    %1061 = vmatprep.subr.bf16.mxu0 0
    %1062 = vmatpush1.bf16.msra.mxu0 0
    %1063 = vmatprep.subr.bf16.mxu0 0
    %1064 = vmatpush1.bf16.msra.mxu0 0
    %1065 = vmatprep.subr.bf16.mxu0 0
    %1066 = vmatpush1.bf16.msra.mxu0 0
    %1067 = vmatprep.subr.bf16.mxu0 0
    %1068 = vmatpush1.bf16.msra.mxu0 0
    %1069 = vmatprep.subr.bf16.mxu0 0
    %1070 = vmatpush1.bf16.msra.mxu0 0
    %1071 = vmatprep.mubr.bf16.mxu0 0
    %1072 = vmatmul.mubr.bf16.gmra.mrb[0].mxu0 %v876
    %v1073 = vpop.f32.mrb[0].mxu0
    %v1074 = vadd.f32 0.0, %v1073
    %v1075 = vpop.f32.mrb[0].mxu0
    %v1076 = vadd.f32 0.0, %v1075
    %v1077 = vpop.f32.mrb[0].mxu0
    %v1078 = vadd.f32 0.0, %v1077
    %v1079 = vpop.f32.mrb[0].mxu0
    %v1080 = vadd.f32 0.0, %v1079
    %1081 = vmatprep.mubr.bf16.mxu0 0
    %1082 = vmatmul.mubr.bf16.gmra.mrb[0].mxu0 %v877
    %v1083 = vpop.f32.mrb[0].mxu0
    %v1084 = vadd.f32 0.0, %v1083
    %v1085 = vpop.f32.mrb[0].mxu0
    %v1086 = vadd.f32 0.0, %v1085
    %v1087 = vpop.f32.mrb[0].mxu0
    %v1088 = vadd.f32 0.0, %v1087
    %v1089 = vpop.f32.mrb[0].mxu0
    %v1090 = vadd.f32 0.0, %v1089
    %1091 = vdwg.mxu0
    %1092 = vmatprep.subr.bf16.mxu0 0
    %1093 = vmatpush1.bf16.msra.mxu0 %v993
    %1094 = vmatprep.subr.bf16.mxu0 0
    %1095 = vmatpush1.bf16.msra.mxu0 %v996
    %1096 = vmatprep.subr.bf16.mxu0 0
    %1097 = vmatpush1.bf16.msra.mxu0 %v999
    %1098 = vmatprep.subr.bf16.mxu0 0
    %1099 = vmatpush1.bf16.msra.mxu0 %v1002
    %1100 = vmatprep.subr.bf16.mxu0 0
    %1101 = vmatpush1.bf16.msra.mxu0 %v1005
    %1102 = vmatprep.subr.bf16.mxu0 0
    %1103 = vmatpush1.bf16.msra.mxu0 %v1008
    %1104 = vmatprep.subr.bf16.mxu0 0
    %1105 = vmatpush1.bf16.msra.mxu0 %v1011
    %1106 = vmatprep.subr.bf16.mxu0 0
    %1107 = vmatpush1.bf16.msra.mxu0 %v1014
    %1108 = vmatprep.subr.bf16.mxu0 0
    %1109 = vmatpush1.bf16.msra.mxu0 0
    %1110 = vmatprep.subr.bf16.mxu0 0
    %1111 = vmatpush1.bf16.msra.mxu0 0
    %1112 = vmatprep.subr.bf16.mxu0 0
    %1113 = vmatpush1.bf16.msra.mxu0 0
    %1114 = vmatprep.subr.bf16.mxu0 0
    %1115 = vmatpush1.bf16.msra.mxu0 0
    %1116 = vmatprep.subr.bf16.mxu0 0
    %1117 = vmatpush1.bf16.msra.mxu0 0
    %1118 = vmatprep.subr.bf16.mxu0 0
    %1119 = vmatpush1.bf16.msra.mxu0 0
    %1120 = vmatprep.subr.bf16.mxu0 0
    %1121 = vmatpush1.bf16.msra.mxu0 0
    %1122 = vmatprep.subr.bf16.mxu0 0
    %1123 = vmatpush1.bf16.msra.mxu0 0
    %1124 = vmatprep.mubr.bf16.mxu0 0
    %1125 = vmatmul.mubr.bf16.gmra.mrb[0].mxu0 %v876
    %v1126 = vpop.f32.mrb[0].mxu0
    %v1127 = vadd.f32 0.0, %v1126
    %v1128 = vpop.f32.mrb[0].mxu0
    %v1129 = vpop.f32.mrb[0].mxu0
    %v1130 = vadd.f32 0.0, %v1129
    %v1131 = vpop.f32.mrb[0].mxu0
    %1132 = vmatprep.mubr.bf16.mxu0 0
    %1133 = vmatmul.mubr.bf16.gmra.mrb[0].mxu0 %v877
    %v1134 = vpop.f32.mrb[0].mxu0
    %v1135 = vadd.f32 0.0, %v1134
    %v1136 = vpop.f32.mrb[0].mxu0
    %v1137 = vpop.f32.mrb[0].mxu0
    %v1138 = vadd.f32 0.0, %v1137
    %v1139 = vpop.f32.mrb[0].mxu0
    %1140 = vdwg.mxu0
    %v1141 = vrot.slane %v1074, 7
    %v1142 = vrot.slane %v1078, 7
    %v1143 = vrot.slane %v1084, 7
    %v1144 = vrot.slane %v1088, 7
    %v1145 = vsel %vm510, %v1143, %v1144
    %v1146 = vsel %vm510, %v1142, %v1143
    %v1147 = vsel %vm510, %v1141, %v1142
    %v1148 = vsel %vm510, %v1144, %v1141
    %v1149 = vmul.f32 %v1148, %v230
    %v1150 = vmul.f32 %v1147, %v231
    %v1151 = vmul.f32 %v1146, %v230
    %v1152 = vmul.f32 %v1145, %v231
    %v1153 = vadd.f32 %v1076, %v1149
    %v1154 = vadd.f32 %v1080, %v1150
    %v1155 = vadd.f32 %v1086, %v1151
    %v1156 = vadd.f32 %v1090, %v1152
    %v1157 = vrot.slane %v1127, 1
    %v1158 = vrot.slane %v1130, 1
    %v1159 = vrot.slane %v1135, 1
    %v1160 = vrot.slane %v1138, 1
    %v1161 = vsel %vm527, %v1159, %v1160
    %v1162 = vsel %vm527, %v1158, %v1159
    %v1163 = vsel %vm527, %v1157, %v1158
    %v1164 = vsel %vm527, %v1160, %v1157
    %v1165 = vmul.f32 %v1163, %v240
    %v1166 = vmul.f32 %v1162, %v241
    %v1167 = vmul.f32 %v1161, %v240
    %v1168 = vmul.f32 %v1164, %v241
    %v1169 = vadd.f32 %v1153, %v1165
    %v1170 = vadd.f32 %v1154, %v1166
    %v1171 = vadd.f32 %v1155, %v1167
    %v1172 = vadd.f32 %v1156, %v1168
    %s1173 = scalar_lea.vmem %s4, 2
    %v1174 = vld [vmem:[%s1173] sm:$0x1]
    %v1176 = vlaneseq
    %v1177 = vshrl.u32 %v1176, 7
    %v1178 = vsub.s32 0, %v1177
    %v1179 = vrot.slane %v1174, %v1178
    %v1181 = vadd.f32 %v1169, %v1179
    %v1182 = vadd.f32 %v1170, %v1179
    %v1183 = vadd.f32 %v1171, %v1179
    %v1184 = vadd.f32 %v1172, %v1179
    %v1185 = vmax.f32 %v1181, 0.0
    %v1186 = vmax.f32 %v1182, 0.0
    %v1187 = vmax.f32 %v1183, 0.0
    %v1188 = vmax.f32 %v1184, 0.0
    %v1189 = vadd.f32 %v872, %v1185
    %v1190 = vadd.f32 %v873, %v1186
    %v1191 = vadd.f32 %v874, %v1187
    %v1192 = vadd.f32 %v875, %v1188
    %v1193 = vpack.c.bf16 %v1190, %v1189
    %v1194 = vpack.c.bf16 %v1192, %v1191
    %v1195 = vld [vmem:[#allocation8] sm:$0xf]
    %v1196 = vld [vmem:[#allocation8 + $0x4] sm:$0xf]
    %v1197 = vld [vmem:[#allocation8 + $0x8] sm:$0xf]
    %v1198 = vld [vmem:[#allocation8 + $0xc] sm:$0xf]
    %v1199 = vld [vmem:[#allocation8 + $0x10] sm:$0xf]
    %v1200 = vld [vmem:[#allocation8 + $0x14] sm:$0xf]
    %v1201 = vld [vmem:[#allocation8 + $0x18] sm:$0xf]
    %v1202 = vld [vmem:[#allocation8 + $0x1c] sm:$0xf]
    %v1203 = vld [vmem:[#allocation8 + $0x20] sm:$0xf]
    %v1204 = vld [vmem:[#allocation8 + $0x24] sm:$0xf]
    %v1205 = vld [vmem:[#allocation8 + $0x28] sm:$0xf]
    %v1206 = vld [vmem:[#allocation8 + $0x2c] sm:$0xf]
    %v1207 = vld [vmem:[#allocation8 + $0x30] sm:$0xf]
    %v1208 = vld [vmem:[#allocation8 + $0x34] sm:$0xf]
    %v1209 = vld [vmem:[#allocation8 + $0x38] sm:$0xf]
    %v1210 = vld [vmem:[#allocation8 + $0x3c] sm:$0xf]
    %v1211 = vld [vmem:[%s6] sm:$0x1]
    %v1213 = vlaneseq
    %v1214 = vshrl.u32 %v1213, 7
    %v1215 = vsub.s32 0, %v1214
    %v1216 = vrot.slane %v1211, %v1215
    %v1234 = vunpack.c.l.b16 %v1195
    %v1235 = vunpack.c.l.b16 %v1196
    %v1236 = vunpack.c.l.b16 %v1197
    %v1237 = vunpack.c.l.b16 %v1198
    %v1238 = vunpack.c.l.b16 %v1199
    %v1239 = vunpack.c.l.b16 %v1200
    %v1240 = vunpack.c.l.b16 %v1201
    %v1241 = vunpack.c.l.b16 %v1202
    %v1242 = vunpack.c.l.b16 %v1203
    %v1243 = vunpack.c.l.b16 %v1204
    %v1244 = vunpack.c.l.b16 %v1205
    %v1245 = vunpack.c.l.b16 %v1206
    %v1246 = vunpack.c.l.b16 %v1207
    %v1247 = vunpack.c.l.b16 %v1208
    %v1248 = vunpack.c.l.b16 %v1209
    %v1249 = vunpack.c.l.b16 %v1210
    %v1250 = vpack.c.b16 %v1235, %v1234
    %v1251 = vpack.c.b16 %v1237, %v1236
    %v1252 = vpack.c.b16 %v1239, %v1238
    %v1253 = vpack.c.b16 %v1241, %v1240
    %v1254 = vpack.c.b16 %v1243, %v1242
    %v1255 = vpack.c.b16 %v1245, %v1244
    %v1256 = vpack.c.b16 %v1247, %v1246
    %v1257 = vpack.c.b16 %v1249, %v1248
    %1266 = vmatprep.subr.bf16.mxu0 0
    %1267 = vmatpush1.bf16.msra.mxu0 %v1250
    %1268 = vmatprep.subr.bf16.mxu0 0
    %1269 = vmatpush1.bf16.msra.mxu0 %v1251
    %1270 = vmatprep.subr.bf16.mxu0 0
    %1271 = vmatpush1.bf16.msra.mxu0 %v1252
    %1272 = vmatprep.subr.bf16.mxu0 0
    %1273 = vmatpush1.bf16.msra.mxu0 %v1253
    %1274 = vmatprep.subr.bf16.mxu0 0
    %1275 = vmatpush1.bf16.msra.mxu0 %v1254
    %1276 = vmatprep.subr.bf16.mxu0 0
    %1277 = vmatpush1.bf16.msra.mxu0 %v1255
    %1278 = vmatprep.subr.bf16.mxu0 0
    %1279 = vmatpush1.bf16.msra.mxu0 %v1256
    %1280 = vmatprep.subr.bf16.mxu0 0
    %1281 = vmatpush1.bf16.msra.mxu0 %v1257
    %1282 = vmatprep.subr.bf16.mxu0 0
    %1283 = vmatpush1.bf16.msra.mxu0 0
    %1284 = vmatprep.subr.bf16.mxu0 0
    %1285 = vmatpush1.bf16.msra.mxu0 0
    %1286 = vmatprep.subr.bf16.mxu0 0
    %1287 = vmatpush1.bf16.msra.mxu0 0
    %1288 = vmatprep.subr.bf16.mxu0 0
    %1289 = vmatpush1.bf16.msra.mxu0 0
    %1290 = vmatprep.subr.bf16.mxu0 0
    %1291 = vmatpush1.bf16.msra.mxu0 0
    %1292 = vmatprep.subr.bf16.mxu0 0
    %1293 = vmatpush1.bf16.msra.mxu0 0
    %1294 = vmatprep.subr.bf16.mxu0 0
    %1295 = vmatpush1.bf16.msra.mxu0 0
    %1296 = vmatprep.subr.bf16.mxu0 0
    %1297 = vmatpush1.bf16.msra.mxu0 0
    %1298 = vmatprep.mubr.bf16.mxu0 0
    %1299 = vmatmul.mubr.bf16.gmra.mrb[0].mxu0 %v1193
    %v1300 = vpop.f32.mrb[0].mxu0
    %v1301 = vadd.f32 %v1216, %v1300
    %v1302 = vpop.f32.mrb[0].mxu0
    %v1303 = vpop.f32.mrb[0].mxu0
    %v1304 = vadd.f32 %v1216, %v1303
    %v1305 = vpop.f32.mrb[0].mxu0
    %1306 = vmatprep.mubr.bf16.mxu0 0
    %1307 = vmatmul.mubr.bf16.gmra.mrb[0].mxu0 %v1194
    %v1308 = vpop.f32.mrb[0].mxu0
    %v1309 = vadd.f32 %v1216, %v1308
    %v1310 = vpop.f32.mrb[0].mxu0
    %v1311 = vpop.f32.mrb[0].mxu0
    %v1312 = vadd.f32 %v1216, %v1311
    %v1313 = vpop.f32.mrb[0].mxu0
    %1314 = vdwg.mxu0
    %1315 = vst [vmem:[#allocation10] sm:$0xff] %v1301
    %1316 = vst [vmem:[#allocation10 + $0x8] sm:$0xff] %v1304
    %1317 = vst [vmem:[#allocation10 + $0x10] sm:$0xff] %v1309
    %1318 = vst [vmem:[#allocation10 + $0x18] sm:$0xff] %v1312
    // Predicated region
    $region46: #{tpu_custom_call.1} parent=1 // pred_check
      _
    $region47: #{tpu_custom_call.1} parent=1 // pred_check_branch
      %1320 = sbr.rel (0) target = $region49
    $region48: #{tpu_custom_call.1} parent=1 // pred_region
      %s1322 = ssub.s32 512, 512
      %1323 = vsyncadd [#allocation4], %s1322
      %s1324 = sshll.u32 [#allocation10], 4
      %s1325 = int_to_ptr.vmem [resolvable:$true] %s1324
      %1330 = dma.vmem_to_hbm [thread:$0]  %s1325, 512, %s7, [#allocation4], 128, 128, 8
    $region49: #{tpu_custom_call.1} parent=1 // pred_fallthru
      _
    // Predicated region
    $region50: #{tpu_custom_call.1} parent=1 // pred_check
      _
    $region51: #{tpu_custom_call.1} parent=1 // pred_check_branch
      %1332 = sbr.rel (0) target = $region53
    $region52: #{tpu_custom_call.1} parent=1 // pred_region
      %1333 = dma.done [#allocation4], 512
    $region53: #{tpu_custom_call.1} parent=1 // pred_fallthru
      _
    %1334 = vsyncpa [#allocation3], 1
    %1335 = vsyncpa [#allocation6], 1
    %1336 = vsyncpa [#allocation9], 1
    %1337 = vsyncpa [#allocation4], 1

// kernel: tpu_custom_call.1
$region0: #{tpu_custom_call.1}
  #allocation0 [shape = 'u32[]', space=smem, size = 0x4, offset = 0x4, fixed_abs, tag = 'smem constant byte address 0x4 - core index']
  #allocation1 [shape = 'u32[144,128]{1,0:T(1,128)}', space=vmem, size = 0x12000, scoped, tag = 'internal scratch']
  %s0 = inlined_call_operand.hbm [shape: bf16[32,128], index: 0, kind: input, shape index: {}]
  %s1 = inlined_call_operand.hbm [shape: bf16[128,128], index: 1, kind: input, shape index: {}]
  %s2 = inlined_call_operand.vmem [shape: f32[1,128], index: 2, kind: input, shape index: {}]
  %s3 = inlined_call_operand.hbm [shape: bf16[3,128,384], index: 3, kind: input, shape index: {}]
  %s4 = inlined_call_operand.vmem [shape: f32[3,1,128], index: 4, kind: input, shape index: {}]
  %s5 = inlined_call_operand.hbm [shape: bf16[128,128], index: 5, kind: input, shape index: {}]
  %s6 = inlined_call_operand.vmem [shape: f32[1,128], index: 6, kind: input, shape index: {}]
  %s7 = inlined_call_operand.hbm [shape: f32[32,128], index: 7, kind: output, shape index: {}]
  %s8 = sld [smem:[#allocation0]]
  $region54: #{tpu_custom_call.1} parent=0
    _
  %s10 = ssub.s32 1, %s8
  %s11 = scalar_select 0, %s10, %s8
  $region1: #{tpu_custom_call.1} parent=0
    #allocation2 [shape = 'u8[8192]{0}', space=vmem, size = 0x2000, scoped, tag = 'input window, operand 0, single buffered']
    #allocation3 [shape = 's32[1]{0}', space=sflag, size = 0x4, scoped, tag = 'scoped memory for tpu_custom_call.1']
    #allocation4 [shape = 's32[1]{0}', space=sflag, size = 0x4, scoped, tag = 'scoped memory for tpu_custom_call.1']
    #allocation5 [shape = 'u8[32768]{0}', space=vmem, size = 0x8000, scoped, tag = 'input window, operand 1, single buffered']
    #allocation6 [shape = 's32[1]{0}', space=sflag, size = 0x4, scoped, tag = 'scoped memory for tpu_custom_call.1']
    #allocation7 [shape = 'u8[294912]{0}', space=vmem, size = 0x48000, scoped, tag = 'input window, operand 3, single buffered']
    #allocation8 [shape = 'u8[32768]{0}', space=vmem, size = 0x8000, scoped, tag = 'input window, operand 5, single buffered']
    #allocation9 [shape = 's32[1]{0}', space=sflag, size = 0x4, scoped, tag = 'scoped memory for tpu_custom_call.1']
    #allocation10 [shape = 'u8[16384]{0}', space=vmem, size = 0x4000, scoped, tag = 'output window, operand 0, single buffered']
    %12 = vsyncpa [#allocation3], 0
    %13 = vsyncpa [#allocation6], 0
    %14 = vsyncpa [#allocation9], 0
    %15 = vsyncpa [#allocation4], 0
    // Predicated region
    $region2: #{tpu_custom_call.1} parent=1 // pred_check
      _
    $region3: #{tpu_custom_call.1} parent=1 // pred_check_branch
      %17 = sbr.rel (0) target = $region5
    $region4: #{tpu_custom_call.1} parent=1 // pred_region
      %s19 = ssub.s32 256, 256
      %20 = vsyncadd [#allocation3], %s19
      %s21 = sshll.u32 [#allocation2], 4
      %s22 = int_to_ptr.vmem [resolvable:$true] %s21
      %27 = dma.hbm_to_vmem [thread:$0]  %s0, 256, %s22, [#allocation3], 64, 64, 4
    $region5: #{tpu_custom_call.1} parent=1 // pred_fallthru
      _
    // Predicated region
    $region6: #{tpu_custom_call.1} parent=1 // pred_check
      _
    $region7: #{tpu_custom_call.1} parent=1 // pred_check_branch
      %29 = sbr.rel (0) target = $region9
    $region8: #{tpu_custom_call.1} parent=1 // pred_region
      %s31 = ssub.s32 1024, 1024
      %32 = vsyncadd [#allocation6], %s31
      %s33 = sshll.u32 [#allocation5], 4
      %s34 = int_to_ptr.vmem [resolvable:$true] %s33
      %39 = dma.hbm_to_vmem [thread:$0]  %s1, 1024, %s34, [#allocation6], 64, 64, 4
    $region9: #{tpu_custom_call.1} parent=1 // pred_fallthru
      _
    // Predicated region
    $region10: #{tpu_custom_call.1} parent=1 // pred_check
      _
    $region11: #{tpu_custom_call.1} parent=1 // pred_check_branch
      %41 = sbr.rel (0) target = $region13
    $region12: #{tpu_custom_call.1} parent=1 // pred_region
      _
    $region13: #{tpu_custom_call.1} parent=1 // pred_fallthru
      _
    // Predicated region
    $region14: #{tpu_custom_call.1} parent=1 // pred_check
      _
    $region15: #{tpu_custom_call.1} parent=1 // pred_check_branch
      %43 = sbr.rel (0) target = $region17
    $region16: #{tpu_custom_call.1} parent=1 // pred_region
      %s45 = ssub.s32 9216, 9216
      %46 = vsyncadd [#allocation6], %s45
      %s47 = sshll.u32 [#allocation7], 4
      %s48 = int_to_ptr.vmem [resolvable:$true] %s47
      %53 = dma.hbm_to_vmem [thread:$0]  %s3, 9216, %s48, [#allocation6], 192, 192, 12
    $region17: #{tpu_custom_call.1} parent=1 // pred_fallthru
      _
    // Predicated region
    $region18: #{tpu_custom_call.1} parent=1 // pred_check
      _
    $region19: #{tpu_custom_call.1} parent=1 // pred_check_branch
      %55 = sbr.rel (0) target = $region21
    $region20: #{tpu_custom_call.1} parent=1 // pred_region
      _
    $region21: #{tpu_custom_call.1} parent=1 // pred_fallthru
      _
    // Predicated region
    $region22: #{tpu_custom_call.1} parent=1 // pred_check
      _
    $region23: #{tpu_custom_call.1} parent=1 // pred_check_branch
      %57 = sbr.rel (0) target = $region25
    $region24: #{tpu_custom_call.1} parent=1 // pred_region
      %s59 = ssub.s32 1024, 1024
      %60 = vsyncadd [#allocation9], %s59
      %s61 = sshll.u32 [#allocation8], 4
      %s62 = int_to_ptr.vmem [resolvable:$true] %s61
      %67 = dma.hbm_to_vmem [thread:$0]  %s5, 1024, %s62, [#allocation9], 64, 64, 4
    $region25: #{tpu_custom_call.1} parent=1 // pred_fallthru
      _
    // Predicated region
    $region26: #{tpu_custom_call.1} parent=1 // pred_check
      _
    $region27: #{tpu_custom_call.1} parent=1 // pred_check_branch
      %69 = sbr.rel (0) target = $region29
    $region28: #{tpu_custom_call.1} parent=1 // pred_region
      _
    $region29: #{tpu_custom_call.1} parent=1 // pred_fallthru
      _
    // Predicated region
    $region30: #{tpu_custom_call.1} parent=1 // pred_check
      _
    $region31: #{tpu_custom_call.1} parent=1 // pred_check_branch
      %71 = sbr.rel (0) target = $region33
    $region32: #{tpu_custom_call.1} parent=1 // pred_region
      %72 = dma.done [#allocation3], 256
    $region33: #{tpu_custom_call.1} parent=1 // pred_fallthru
      _
    // Predicated region
    $region34: #{tpu_custom_call.1} parent=1 // pred_check
      _
    $region35: #{tpu_custom_call.1} parent=1 // pred_check_branch
      %74 = sbr.rel (0) target = $region37
    $region36: #{tpu_custom_call.1} parent=1 // pred_region
      %75 = dma.done [#allocation6], 1024
    $region37: #{tpu_custom_call.1} parent=1 // pred_fallthru
      _
    // Predicated region
    $region38: #{tpu_custom_call.1} parent=1 // pred_check
      _
    $region39: #{tpu_custom_call.1} parent=1 // pred_check_branch
      %77 = sbr.rel (0) target = $region41
    $region40: #{tpu_custom_call.1} parent=1 // pred_region
      %78 = dma.done [#allocation6], 9216
    $region41: #{tpu_custom_call.1} parent=1 // pred_fallthru
      _
    // Predicated region
    $region42: #{tpu_custom_call.1} parent=1 // pred_check
      _
    $region43: #{tpu_custom_call.1} parent=1 // pred_check_branch
      %80 = sbr.rel (0) target = $region45
    $region44: #{tpu_custom_call.1} parent=1 // pred_region
      %81 = dma.done [#allocation9], 1024
    $region45: #{tpu_custom_call.1} parent=1 // pred_fallthru
      _
    %v83 = vld [vmem:[#allocation2] sm:$0xf]
    %v84 = vld [vmem:[#allocation2 + $0x4] sm:$0xf]
    %v85 = vld [vmem:[#allocation2 + $0x8] sm:$0xf]
    %v86 = vld [vmem:[#allocation2 + $0xc] sm:$0xf]
    %v87 = vld [vmem:[#allocation5] sm:$0xf]
    %v88 = vld [vmem:[#allocation5 + $0x4] sm:$0xf]
    %v89 = vld [vmem:[#allocation5 + $0x8] sm:$0xf]
    %v90 = vld [vmem:[#allocation5 + $0xc] sm:$0xf]
    %v91 = vld [vmem:[#allocation5 + $0x10] sm:$0xf]
    %v92 = vld [vmem:[#allocation5 + $0x14] sm:$0xf]
    %v93 = vld [vmem:[#allocation5 + $0x18] sm:$0xf]
    %v94 = vld [vmem:[#allocation5 + $0x1c] sm:$0xf]
    %v95 = vld [vmem:[#allocation5 + $0x20] sm:$0xf]
    %v96 = vld [vmem:[#allocation5 + $0x24] sm:$0xf]
    %v97 = vld [vmem:[#allocation5 + $0x28] sm:$0xf]
    %v98 = vld [vmem:[#allocation5 + $0x2c] sm:$0xf]
    %v99 = vld [vmem:[#allocation5 + $0x30] sm:$0xf]
    %v100 = vld [vmem:[#allocation5 + $0x34] sm:$0xf]
    %v101 = vld [vmem:[#allocation5 + $0x38] sm:$0xf]
    %v102 = vld [vmem:[#allocation5 + $0x3c] sm:$0xf]
    %v103 = vld [vmem:[%s2] sm:$0x1]
    %v105 = vlaneseq
    %v106 = vshrl.u32 %v105, 7
    %v107 = vsub.s32 0, %v106
    %v108 = vrot.slane %v103, %v107
    %v114 = vunpack.c.l.b16 %v83
    %v115 = vunpack.c.l.b16 %v84
    %v116 = vunpack.c.l.b16 %v85
    %v117 = vunpack.c.l.b16 %v86
    %v118 = vpack.c.b16 %v115, %v114
    %v119 = vpack.c.b16 %v117, %v116
    %v138 = vunpack.c.l.b16 %v87
    %v139 = vunpack.c.l.b16 %v88
    %v140 = vunpack.c.l.b16 %v89
    %v141 = vunpack.c.l.b16 %v90
    %v142 = vunpack.c.l.b16 %v91
    %v143 = vunpack.c.l.b16 %v92
    %v144 = vunpack.c.l.b16 %v93
    %v145 = vunpack.c.l.b16 %v94
    %v146 = vunpack.c.l.b16 %v95
    %v147 = vunpack.c.l.b16 %v96
    %v148 = vunpack.c.l.b16 %v97
    %v149 = vunpack.c.l.b16 %v98
    %v150 = vunpack.c.l.b16 %v99
    %v151 = vunpack.c.l.b16 %v100
    %v152 = vunpack.c.l.b16 %v101
    %v153 = vunpack.c.l.b16 %v102
    %v154 = vpack.c.b16 %v139, %v138
    %v155 = vpack.c.b16 %v141, %v140
    %v156 = vpack.c.b16 %v143, %v142
    %v157 = vpack.c.b16 %v145, %v144
    %v158 = vpack.c.b16 %v147, %v146
    %v159 = vpack.c.b16 %v149, %v148
    %v160 = vpack.c.b16 %v151, %v150
    %v161 = vpack.c.b16 %v153, %v152
    %170 = vmatprep.subr.bf16.mxu0 0
    %171 = vmatpush1.bf16.msra.mxu0 %v154
    %172 = vmatprep.subr.bf16.mxu0 0
    %173 = vmatpush1.bf16.msra.mxu0 %v155
    %174 = vmatprep.subr.bf16.mxu0 0
    %175 = vmatpush1.bf16.msra.mxu0 %v156
    %176 = vmatprep.subr.bf16.mxu0 0
    %177 = vmatpush1.bf16.msra.mxu0 %v157
    %178 = vmatprep.subr.bf16.mxu0 0
    %179 = vmatpush1.bf16.msra.mxu0 %v158
    %180 = vmatprep.subr.bf16.mxu0 0
    %181 = vmatpush1.bf16.msra.mxu0 %v159
    %182 = vmatprep.subr.bf16.mxu0 0
    %183 = vmatpush1.bf16.msra.mxu0 %v160
    %184 = vmatprep.subr.bf16.mxu0 0
    %185 = vmatpush1.bf16.msra.mxu0 %v161
    %186 = vmatprep.subr.bf16.mxu0 0
    %187 = vmatpush1.bf16.msra.mxu0 0
    %188 = vmatprep.subr.bf16.mxu0 0
    %189 = vmatpush1.bf16.msra.mxu0 0
    %190 = vmatprep.subr.bf16.mxu0 0
    %191 = vmatpush1.bf16.msra.mxu0 0
    %192 = vmatprep.subr.bf16.mxu0 0
    %193 = vmatpush1.bf16.msra.mxu0 0
    %194 = vmatprep.subr.bf16.mxu0 0
    %195 = vmatpush1.bf16.msra.mxu0 0
    %196 = vmatprep.subr.bf16.mxu0 0
    %197 = vmatpush1.bf16.msra.mxu0 0
    %198 = vmatprep.subr.bf16.mxu0 0
    %199 = vmatpush1.bf16.msra.mxu0 0
    %200 = vmatprep.subr.bf16.mxu0 0
    %201 = vmatpush1.bf16.msra.mxu0 0
    %202 = vmatprep.mubr.bf16.mxu0 0
    %203 = vmatmul.mubr.bf16.gmra.mrb[0].mxu0 %v118
    %v204 = vpop.f32.mrb[0].mxu0
    %v205 = vadd.f32 %v108, %v204
    %v206 = vpop.f32.mrb[0].mxu0
    %v207 = vpop.f32.mrb[0].mxu0
    %v208 = vadd.f32 %v108, %v207
    %v209 = vpop.f32.mrb[0].mxu0
    %210 = vmatprep.mubr.bf16.mxu0 0
    %211 = vmatmul.mubr.bf16.gmra.mrb[0].mxu0 %v119
    %v212 = vpop.f32.mrb[0].mxu0
    %v213 = vadd.f32 %v108, %v212
    %v214 = vpop.f32.mrb[0].mxu0
    %v215 = vpop.f32.mrb[0].mxu0
    %v216 = vadd.f32 %v108, %v215
    %v217 = vpop.f32.mrb[0].mxu0
    %218 = vdwg.mxu0
    %v219 = vlaneseq
    %v220 = vshrl.u32 %v219, 7
    %v221 = vadd.s32 %v220, 8
    %vm222 = vcmp.ge.s32.totalorder %v220, 1
    %vm223 = vcmp.ge.s32.totalorder %v221, 1
    %vm224 = vcmp.lt.s32.totalorder %v220, 16
    %vm225 = vcmp.lt.s32.totalorder %v221, 16
    %vm226 = vmand %vm222, %vm224
    %vm227 = vmand %vm223, %vm225
    %v228 = vsel %vm226, 1, 0
    %v229 = vsel %vm227, 1, 0
    %v230 = vcvt.s32.f32 %v228
    %v231 = vcvt.s32.f32 %v229
    %vm232 = vcmp.ge.s32.totalorder %v220, 0
    %vm233 = vcmp.ge.s32.totalorder %v221, 0
    %vm234 = vcmp.lt.s32.totalorder %v220, 15
    %vm235 = vcmp.lt.s32.totalorder %v221, 15
    %vm236 = vmand %vm232, %vm234
    %vm237 = vmand %vm233, %vm235
    %v238 = vsel %vm236, 1, 0
    %v239 = vsel %vm237, 1, 0
    %v240 = vcvt.s32.f32 %v238
    %v241 = vcvt.s32.f32 %v239
    %v242 = vpack.c.bf16 %v208, %v205
    %v243 = vpack.c.bf16 %v216, %v213
    %v244 = vld [vmem:[#allocation7] sm:$0xff]
    %v245 = vld [vmem:[#allocation7 + $0x8] sm:$0xf]
    %v246 = vld [vmem:[#allocation7 + $0xc] sm:$0xff]
    %v247 = vld [vmem:[#allocation7 + $0x14] sm:$0xf]
    %v248 = vld [vmem:[#allocation7 + $0x18] sm:$0xff]
    %v249 = vld [vmem:[#allocation7 + $0x20] sm:$0xf]
    %v250 = vld [vmem:[#allocation7 + $0x24] sm:$0xff]
    %v251 = vld [vmem:[#allocation7 + $0x2c] sm:$0xf]
    %v252 = vld [vmem:[#allocation7 + $0x30] sm:$0xff]
    %v253 = vld [vmem:[#allocation7 + $0x38] sm:$0xf]
    %v254 = vld [vmem:[#allocation7 + $0x3c] sm:$0xff]
    %v255 = vld [vmem:[#allocation7 + $0x44] sm:$0xf]
    %v256 = vld [vmem:[#allocation7 + $0x48] sm:$0xff]
    %v257 = vld [vmem:[#allocation7 + $0x50] sm:$0xf]
    %v258 = vld [vmem:[#allocation7 + $0x54] sm:$0xff]
    %v259 = vld [vmem:[#allocation7 + $0x5c] sm:$0xf]
    %v260 = vld [vmem:[#allocation7 + $0x60] sm:$0xff]
    %v261 = vld [vmem:[#allocation7 + $0x68] sm:$0xf]
    %v262 = vld [vmem:[#allocation7 + $0x6c] sm:$0xff]
    %v263 = vld [vmem:[#allocation7 + $0x74] sm:$0xf]
    %v264 = vld [vmem:[#allocation7 + $0x78] sm:$0xff]
    %v265 = vld [vmem:[#allocation7 + $0x80] sm:$0xf]
    %v266 = vld [vmem:[#allocation7 + $0x84] sm:$0xff]
    %v267 = vld [vmem:[#allocation7 + $0x8c] sm:$0xf]
    %v268 = vld [vmem:[#allocation7 + $0x90] sm:$0xff]
    %v269 = vld [vmem:[#allocation7 + $0x98] sm:$0xf]
    %v270 = vld [vmem:[#allocation7 + $0x9c] sm:$0xff]
    %v271 = vld [vmem:[#allocation7 + $0xa4] sm:$0xf]
    %v272 = vld [vmem:[#allocation7 + $0xa8] sm:$0xff]
    %v273 = vld [vmem:[#allocation7 + $0xb0] sm:$0xf]
    %v274 = vld [vmem:[#allocation7 + $0xb4] sm:$0xff]
    %v275 = vld [vmem:[#allocation7 + $0xbc] sm:$0xf]
    %v308 = vunpack.c.l.b16 %v244
    %v309 = vunpack.c.h.b16 %v244
    %v310 = vunpack.c.l.b16 %v245
    %v311 = vunpack.c.l.b16 %v246
    %v312 = vunpack.c.h.b16 %v246
    %v313 = vunpack.c.l.b16 %v247
    %v314 = vunpack.c.l.b16 %v248
    %v315 = vunpack.c.h.b16 %v248
    %v316 = vunpack.c.l.b16 %v249
    %v317 = vunpack.c.l.b16 %v250
    %v318 = vunpack.c.h.b16 %v250
    %v319 = vunpack.c.l.b16 %v251
    %v320 = vunpack.c.l.b16 %v252
    %v321 = vunpack.c.h.b16 %v252
    %v322 = vunpack.c.l.b16 %v253
    %v323 = vunpack.c.l.b16 %v254
    %v324 = vunpack.c.h.b16 %v254
    %v325 = vunpack.c.l.b16 %v255
    %v326 = vunpack.c.l.b16 %v256
    %v327 = vunpack.c.h.b16 %v256
    %v328 = vunpack.c.l.b16 %v257
    %v329 = vunpack.c.l.b16 %v258
    %v330 = vunpack.c.h.b16 %v258
    %v331 = vunpack.c.l.b16 %v259
    %v332 = vunpack.c.l.b16 %v260
    %v333 = vunpack.c.h.b16 %v260
    %v334 = vunpack.c.l.b16 %v261
    %v335 = vunpack.c.l.b16 %v262
    %v336 = vunpack.c.h.b16 %v262
    %v337 = vunpack.c.l.b16 %v263
    %v338 = vunpack.c.l.b16 %v264
    %v339 = vunpack.c.h.b16 %v264
    %v340 = vunpack.c.l.b16 %v265
    %v341 = vunpack.c.l.b16 %v266
    %v342 = vunpack.c.h.b16 %v266
    %v343 = vunpack.c.l.b16 %v267
    %v344 = vunpack.c.l.b16 %v268
    %v345 = vunpack.c.h.b16 %v268
    %v346 = vunpack.c.l.b16 %v269
    %v347 = vunpack.c.l.b16 %v270
    %v348 = vunpack.c.h.b16 %v270
    %v349 = vunpack.c.l.b16 %v271
    %v350 = vunpack.c.l.b16 %v272
    %v351 = vunpack.c.h.b16 %v272
    %v352 = vunpack.c.l.b16 %v273
    %v353 = vunpack.c.l.b16 %v274
    %v354 = vunpack.c.h.b16 %v274
    %v355 = vunpack.c.l.b16 %v275
    %v356 = vpack.c.b16 %v311, %v308
    %v357 = vpack.c.b16 %v312, %v309
    %v358 = vpack.c.b16 %v313, %v310
    %v359 = vpack.c.b16 %v317, %v314
    %v360 = vpack.c.b16 %v318, %v315
    %v361 = vpack.c.b16 %v319, %v316
    %v362 = vpack.c.b16 %v323, %v320
    %v363 = vpack.c.b16 %v324, %v321
    %v364 = vpack.c.b16 %v325, %v322
    %v365 = vpack.c.b16 %v329, %v326
    %v366 = vpack.c.b16 %v330, %v327
    %v367 = vpack.c.b16 %v331, %v328
    %v368 = vpack.c.b16 %v335, %v332
    %v369 = vpack.c.b16 %v336, %v333
    %v370 = vpack.c.b16 %v337, %v334
    %v371 = vpack.c.b16 %v341, %v338
    %v372 = vpack.c.b16 %v342, %v339
    %v373 = vpack.c.b16 %v343, %v340
    %v374 = vpack.c.b16 %v347, %v344
    %v375 = vpack.c.b16 %v348, %v345
    %v376 = vpack.c.b16 %v349, %v346
    %v377 = vpack.c.b16 %v353, %v350
    %v378 = vpack.c.b16 %v354, %v351
    %v379 = vpack.c.b16 %v355, %v352
    %404 = vmatprep.subr.bf16.mxu0 %v357
    %405 = vmatpush1.bf16.msra.mxu0 %v356
    %406 = vmatprep.subr.bf16.mxu0 %v360
    %407 = vmatpush1.bf16.msra.mxu0 %v359
    %408 = vmatprep.subr.bf16.mxu0 %v363
    %409 = vmatpush1.bf16.msra.mxu0 %v362
    %410 = vmatprep.subr.bf16.mxu0 %v366
    %411 = vmatpush1.bf16.msra.mxu0 %v365
    %412 = vmatprep.subr.bf16.mxu0 %v369
    %413 = vmatpush1.bf16.msra.mxu0 %v368
    %414 = vmatprep.subr.bf16.mxu0 %v372
    %415 = vmatpush1.bf16.msra.mxu0 %v371
    %416 = vmatprep.subr.bf16.mxu0 %v375
    %417 = vmatpush1.bf16.msra.mxu0 %v374
    %418 = vmatprep.subr.bf16.mxu0 %v378
    %419 = vmatpush1.bf16.msra.mxu0 %v377
    %420 = vmatprep.subr.bf16.mxu0 0
    %421 = vmatpush1.bf16.msra.mxu0 0
    %422 = vmatprep.subr.bf16.mxu0 0
    %423 = vmatpush1.bf16.msra.mxu0 0
    %424 = vmatprep.subr.bf16.mxu0 0
    %425 = vmatpush1.bf16.msra.mxu0 0
    %426 = vmatprep.subr.bf16.mxu0 0
    %427 = vmatpush1.bf16.msra.mxu0 0
    %428 = vmatprep.subr.bf16.mxu0 0
    %429 = vmatpush1.bf16.msra.mxu0 0
    %430 = vmatprep.subr.bf16.mxu0 0
    %431 = vmatpush1.bf16.msra.mxu0 0
    %432 = vmatprep.subr.bf16.mxu0 0
    %433 = vmatpush1.bf16.msra.mxu0 0
    %434 = vmatprep.subr.bf16.mxu0 0
    %435 = vmatpush1.bf16.msra.mxu0 0
    %436 = vmatprep.mubr.bf16.mxu0 0
    %437 = vmatmul.mubr.bf16.gmra.mrb[0].mxu0 %v242
    %v438 = vpop.f32.mrb[0].mxu0
    %v439 = vadd.f32 0.0, %v438
    %v440 = vpop.f32.mrb[0].mxu0
    %v441 = vadd.f32 0.0, %v440
    %v442 = vpop.f32.mrb[0].mxu0
    %v443 = vadd.f32 0.0, %v442
    %v444 = vpop.f32.mrb[0].mxu0
    %v445 = vadd.f32 0.0, %v444
    %446 = vmatprep.mubr.bf16.mxu0 0
    %447 = vmatmul.mubr.bf16.gmra.mrb[0].mxu0 %v243
    %v448 = vpop.f32.mrb[0].mxu0
    %v449 = vadd.f32 0.0, %v448
    %v450 = vpop.f32.mrb[0].mxu0
    %v451 = vadd.f32 0.0, %v450
    %v452 = vpop.f32.mrb[0].mxu0
    %v453 = vadd.f32 0.0, %v452
    %v454 = vpop.f32.mrb[0].mxu0
    %v455 = vadd.f32 0.0, %v454
    %456 = vdwg.mxu0
    %457 = vmatprep.subr.bf16.mxu0 0
    %458 = vmatpush1.bf16.msra.mxu0 %v358
    %459 = vmatprep.subr.bf16.mxu0 0
    %460 = vmatpush1.bf16.msra.mxu0 %v361
    %461 = vmatprep.subr.bf16.mxu0 0
    %462 = vmatpush1.bf16.msra.mxu0 %v364
    %463 = vmatprep.subr.bf16.mxu0 0
    %464 = vmatpush1.bf16.msra.mxu0 %v367
    %465 = vmatprep.subr.bf16.mxu0 0
    %466 = vmatpush1.bf16.msra.mxu0 %v370
    %467 = vmatprep.subr.bf16.mxu0 0
    %468 = vmatpush1.bf16.msra.mxu0 %v373
    %469 = vmatprep.subr.bf16.mxu0 0
    %470 = vmatpush1.bf16.msra.mxu0 %v376
    %471 = vmatprep.subr.bf16.mxu0 0
    %472 = vmatpush1.bf16.msra.mxu0 %v379
    %473 = vmatprep.subr.bf16.mxu0 0
    %474 = vmatpush1.bf16.msra.mxu0 0
    %475 = vmatprep.subr.bf16.mxu0 0
    %476 = vmatpush1.bf16.msra.mxu0 0
    %477 = vmatprep.subr.bf16.mxu0 0
    %478 = vmatpush1.bf16.msra.mxu0 0
    %479 = vmatprep.subr.bf16.mxu0 0
    %480 = vmatpush1.bf16.msra.mxu0 0
    %481 = vmatprep.subr.bf16.mxu0 0
    %482 = vmatpush1.bf16.msra.mxu0 0
    %483 = vmatprep.subr.bf16.mxu0 0
    %484 = vmatpush1.bf16.msra.mxu0 0
    %485 = vmatprep.subr.bf16.mxu0 0
    %486 = vmatpush1.bf16.msra.mxu0 0
    %487 = vmatprep.subr.bf16.mxu0 0
    %488 = vmatpush1.bf16.msra.mxu0 0
    %489 = vmatprep.mubr.bf16.mxu0 0
    %490 = vmatmul.mubr.bf16.gmra.mrb[0].mxu0 %v242
    %v491 = vpop.f32.mrb[0].mxu0
    %v492 = vadd.f32 0.0, %v491
    %v493 = vpop.f32.mrb[0].mxu0
    %v494 = vpop.f32.mrb[0].mxu0
    %v495 = vadd.f32 0.0, %v494
    %v496 = vpop.f32.mrb[0].mxu0
    %497 = vmatprep.mubr.bf16.mxu0 0
    %498 = vmatmul.mubr.bf16.gmra.mrb[0].mxu0 %v243
    %v499 = vpop.f32.mrb[0].mxu0
    %v500 = vadd.f32 0.0, %v499
    %v501 = vpop.f32.mrb[0].mxu0
    %v502 = vpop.f32.mrb[0].mxu0
    %v503 = vadd.f32 0.0, %v502
    %v504 = vpop.f32.mrb[0].mxu0
    %505 = vdwg.mxu0
    %v506 = vrot.slane %v439, 7
    %v507 = vrot.slane %v443, 7
    %v508 = vrot.slane %v449, 7
    %v509 = vrot.slane %v453, 7
    %vm510 = vcmp.lt.s32.totalorder %v220, 1
    %v511 = vsel %vm510, %v508, %v509
    %v512 = vsel %vm510, %v507, %v508
    %v513 = vsel %vm510, %v506, %v507
    %v514 = vsel %vm510, %v509, %v506
    %v515 = vmul.f32 %v514, %v230
    %v516 = vmul.f32 %v513, %v231
    %v517 = vmul.f32 %v512, %v230
    %v518 = vmul.f32 %v511, %v231
    %v519 = vadd.f32 %v441, %v515
    %v520 = vadd.f32 %v445, %v516
    %v521 = vadd.f32 %v451, %v517
    %v522 = vadd.f32 %v455, %v518
    %v523 = vrot.slane %v492, 1
    %v524 = vrot.slane %v495, 1
    %v525 = vrot.slane %v500, 1
    %v526 = vrot.slane %v503, 1
    %vm527 = vcmp.lt.s32.totalorder %v220, 7
    %v528 = vsel %vm527, %v525, %v526
    %v529 = vsel %vm527, %v524, %v525
    %v530 = vsel %vm527, %v523, %v524
    %v531 = vsel %vm527, %v526, %v523
    %v532 = vmul.f32 %v530, %v240
    %v533 = vmul.f32 %v529, %v241
    %v534 = vmul.f32 %v528, %v240
    %v535 = vmul.f32 %v531, %v241
    %v536 = vadd.f32 %v519, %v532
    %v537 = vadd.f32 %v520, %v533
    %v538 = vadd.f32 %v521, %v534
    %v539 = vadd.f32 %v522, %v535
    %v540 = vld [vmem:[%s4] sm:$0x1]
    %v542 = vlaneseq
    %v543 = vshrl.u32 %v542, 7
    %v544 = vsub.s32 0, %v543
    %v545 = vrot.slane %v540, %v544
    %v547 = vadd.f32 %v536, %v545
    %v548 = vadd.f32 %v537, %v545
    %v549 = vadd.f32 %v538, %v545
    %v550 = vadd.f32 %v539, %v545
    %v551 = vmax.f32 %v547, 0.0
    %v552 = vmax.f32 %v548, 0.0
    %v553 = vmax.f32 %v549, 0.0
    %v554 = vmax.f32 %v550, 0.0
    %v555 = vadd.f32 %v205, %v551
    %v556 = vadd.f32 %v208, %v552
    %v557 = vadd.f32 %v213, %v553
    %v558 = vadd.f32 %v216, %v554
    %v559 = vpack.c.bf16 %v556, %v555
    %v560 = vpack.c.bf16 %v558, %v557
    %s561 = scalar_lea.vmem [#allocation7], 192
    %v562 = vld [vmem:[%s561] sm:$0xff]
    %v563 = vld [vmem:[%s561 + $0x8] sm:$0xf]
    %v564 = vld [vmem:[%s561 + $0xc] sm:$0xff]
    %v565 = vld [vmem:[%s561 + $0x14] sm:$0xf]
    %v566 = vld [vmem:[%s561 + $0x18] sm:$0xff]
    %v567 = vld [vmem:[%s561 + $0x20] sm:$0xf]
    %v568 = vld [vmem:[%s561 + $0x24] sm:$0xff]
    %v569 = vld [vmem:[%s561 + $0x2c] sm:$0xf]
    %v570 = vld [vmem:[%s561 + $0x30] sm:$0xff]
    %v571 = vld [vmem:[%s561 + $0x38] sm:$0xf]
    %v572 = vld [vmem:[%s561 + $0x3c] sm:$0xff]
    %v573 = vld [vmem:[%s561 + $0x44] sm:$0xf]
    %v574 = vld [vmem:[%s561 + $0x48] sm:$0xff]
    %v575 = vld [vmem:[%s561 + $0x50] sm:$0xf]
    %v576 = vld [vmem:[%s561 + $0x54] sm:$0xff]
    %v577 = vld [vmem:[%s561 + $0x5c] sm:$0xf]
    %v578 = vld [vmem:[%s561 + $0x60] sm:$0xff]
    %v579 = vld [vmem:[%s561 + $0x68] sm:$0xf]
    %v580 = vld [vmem:[%s561 + $0x6c] sm:$0xff]
    %v581 = vld [vmem:[%s561 + $0x74] sm:$0xf]
    %v582 = vld [vmem:[%s561 + $0x78] sm:$0xff]
    %v583 = vld [vmem:[%s561 + $0x80] sm:$0xf]
    %v584 = vld [vmem:[%s561 + $0x84] sm:$0xff]
    %v585 = vld [vmem:[%s561 + $0x8c] sm:$0xf]
    %v586 = vld [vmem:[%s561 + $0x90] sm:$0xff]
    %v587 = vld [vmem:[%s561 + $0x98] sm:$0xf]
    %v588 = vld [vmem:[%s561 + $0x9c] sm:$0xff]
    %v589 = vld [vmem:[%s561 + $0xa4] sm:$0xf]
    %v590 = vld [vmem:[%s561 + $0xa8] sm:$0xff]
    %v591 = vld [vmem:[%s561 + $0xb0] sm:$0xf]
    %v592 = vld [vmem:[%s561 + $0xb4] sm:$0xff]
    %v593 = vld [vmem:[%s561 + $0xbc] sm:$0xf]
    %v626 = vunpack.c.l.b16 %v562
    %v627 = vunpack.c.h.b16 %v562
    %v628 = vunpack.c.l.b16 %v563
    %v629 = vunpack.c.l.b16 %v564
    %v630 = vunpack.c.h.b16 %v564
    %v631 = vunpack.c.l.b16 %v565
    %v632 = vunpack.c.l.b16 %v566
    %v633 = vunpack.c.h.b16 %v566
    %v634 = vunpack.c.l.b16 %v567
    %v635 = vunpack.c.l.b16 %v568
    %v636 = vunpack.c.h.b16 %v568
    %v637 = vunpack.c.l.b16 %v569
    %v638 = vunpack.c.l.b16 %v570
    %v639 = vunpack.c.h.b16 %v570
    %v640 = vunpack.c.l.b16 %v571
    %v641 = vunpack.c.l.b16 %v572
    %v642 = vunpack.c.h.b16 %v572
    %v643 = vunpack.c.l.b16 %v573
    %v644 = vunpack.c.l.b16 %v574
    %v645 = vunpack.c.h.b16 %v574
    %v646 = vunpack.c.l.b16 %v575
    %v647 = vunpack.c.l.b16 %v576
    %v648 = vunpack.c.h.b16 %v576
    %v649 = vunpack.c.l.b16 %v577
    %v650 = vunpack.c.l.b16 %v578
    %v651 = vunpack.c.h.b16 %v578
    %v652 = vunpack.c.l.b16 %v579
    %v653 = vunpack.c.l.b16 %v580
    %v654 = vunpack.c.h.b16 %v580
    %v655 = vunpack.c.l.b16 %v581
    %v656 = vunpack.c.l.b16 %v582
    %v657 = vunpack.c.h.b16 %v582
    %v658 = vunpack.c.l.b16 %v583
    %v659 = vunpack.c.l.b16 %v584
    %v660 = vunpack.c.h.b16 %v584
    %v661 = vunpack.c.l.b16 %v585
    %v662 = vunpack.c.l.b16 %v586
    %v663 = vunpack.c.h.b16 %v586
    %v664 = vunpack.c.l.b16 %v587
    %v665 = vunpack.c.l.b16 %v588
    %v666 = vunpack.c.h.b16 %v588
    %v667 = vunpack.c.l.b16 %v589
    %v668 = vunpack.c.l.b16 %v590
    %v669 = vunpack.c.h.b16 %v590
    %v670 = vunpack.c.l.b16 %v591
    %v671 = vunpack.c.l.b16 %v592
    %v672 = vunpack.c.h.b16 %v592
    %v673 = vunpack.c.l.b16 %v593
    %v674 = vpack.c.b16 %v629, %v626
    %v675 = vpack.c.b16 %v630, %v627
    %v676 = vpack.c.b16 %v631, %v628
    %v677 = vpack.c.b16 %v635, %v632
    %v678 = vpack.c.b16 %v636, %v633
    %v679 = vpack.c.b16 %v637, %v634
    %v680 = vpack.c.b16 %v641, %v638
    %v681 = vpack.c.b16 %v642, %v639
    %v682 = vpack.c.b16 %v643, %v640
    %v683 = vpack.c.b16 %v647, %v644
    %v684 = vpack.c.b16 %v648, %v645
    %v685 = vpack.c.b16 %v649, %v646
    %v686 = vpack.c.b16 %v653, %v650
    %v687 = vpack.c.b16 %v654, %v651
    %v688 = vpack.c.b16 %v655, %v652
    %v689 = vpack.c.b16 %v659, %v656
    %v690 = vpack.c.b16 %v660, %v657
    %v691 = vpack.c.b16 %v661, %v658
    %v692 = vpack.c.b16 %v665, %v662
    %v693 = vpack.c.b16 %v666, %v663
    %v694 = vpack.c.b16 %v667, %v664
    %v695 = vpack.c.b16 %v671, %v668
    %v696 = vpack.c.b16 %v672, %v669
    %v697 = vpack.c.b16 %v673, %v670
    %722 = vmatprep.subr.bf16.mxu0 %v675
    %723 = vmatpush1.bf16.msra.mxu0 %v674
    %724 = vmatprep.subr.bf16.mxu0 %v678
    %725 = vmatpush1.bf16.msra.mxu0 %v677
    %726 = vmatprep.subr.bf16.mxu0 %v681
    %727 = vmatpush1.bf16.msra.mxu0 %v680
    %728 = vmatprep.subr.bf16.mxu0 %v684
    %729 = vmatpush1.bf16.msra.mxu0 %v683
    %730 = vmatprep.subr.bf16.mxu0 %v687
    %731 = vmatpush1.bf16.msra.mxu0 %v686
    %732 = vmatprep.subr.bf16.mxu0 %v690
    %733 = vmatpush1.bf16.msra.mxu0 %v689
    %734 = vmatprep.subr.bf16.mxu0 %v693
    %735 = vmatpush1.bf16.msra.mxu0 %v692
    %736 = vmatprep.subr.bf16.mxu0 %v696
    %737 = vmatpush1.bf16.msra.mxu0 %v695
    %738 = vmatprep.subr.bf16.mxu0 0
    %739 = vmatpush1.bf16.msra.mxu0 0
    %740 = vmatprep.subr.bf16.mxu0 0
    %741 = vmatpush1.bf16.msra.mxu0 0
    %742 = vmatprep.subr.bf16.mxu0 0
    %743 = vmatpush1.bf16.msra.mxu0 0
    %744 = vmatprep.subr.bf16.mxu0 0
    %745 = vmatpush1.bf16.msra.mxu0 0
    %746 = vmatprep.subr.bf16.mxu0 0
    %747 = vmatpush1.bf16.msra.mxu0 0
    %748 = vmatprep.subr.bf16.mxu0 0
    %749 = vmatpush1.bf16.msra.mxu0 0
    %750 = vmatprep.subr.bf16.mxu0 0
    %751 = vmatpush1.bf16.msra.mxu0 0
    %752 = vmatprep.subr.bf16.mxu0 0
    %753 = vmatpush1.bf16.msra.mxu0 0
    %754 = vmatprep.mubr.bf16.mxu0 0
    %755 = vmatmul.mubr.bf16.gmra.mrb[0].mxu0 %v559
    %v756 = vpop.f32.mrb[0].mxu0
    %v757 = vadd.f32 0.0, %v756
    %v758 = vpop.f32.mrb[0].mxu0
    %v759 = vadd.f32 0.0, %v758
    %v760 = vpop.f32.mrb[0].mxu0
    %v761 = vadd.f32 0.0, %v760
    %v762 = vpop.f32.mrb[0].mxu0
    %v763 = vadd.f32 0.0, %v762
    %764 = vmatprep.mubr.bf16.mxu0 0
    %765 = vmatmul.mubr.bf16.gmra.mrb[0].mxu0 %v560
    %v766 = vpop.f32.mrb[0].mxu0
    %v767 = vadd.f32 0.0, %v766
    %v768 = vpop.f32.mrb[0].mxu0
    %v769 = vadd.f32 0.0, %v768
    %v770 = vpop.f32.mrb[0].mxu0
    %v771 = vadd.f32 0.0, %v770
    %v772 = vpop.f32.mrb[0].mxu0
    %v773 = vadd.f32 0.0, %v772
    %774 = vdwg.mxu0
    %775 = vmatprep.subr.bf16.mxu0 0
    %776 = vmatpush1.bf16.msra.mxu0 %v676
    %777 = vmatprep.subr.bf16.mxu0 0
    %778 = vmatpush1.bf16.msra.mxu0 %v679
    %779 = vmatprep.subr.bf16.mxu0 0
    %780 = vmatpush1.bf16.msra.mxu0 %v682
    %781 = vmatprep.subr.bf16.mxu0 0
    %782 = vmatpush1.bf16.msra.mxu0 %v685
    %783 = vmatprep.subr.bf16.mxu0 0
    %784 = vmatpush1.bf16.msra.mxu0 %v688
    %785 = vmatprep.subr.bf16.mxu0 0
    %786 = vmatpush1.bf16.msra.mxu0 %v691
    %787 = vmatprep.subr.bf16.mxu0 0
    %788 = vmatpush1.bf16.msra.mxu0 %v694
    %789 = vmatprep.subr.bf16.mxu0 0
    %790 = vmatpush1.bf16.msra.mxu0 %v697
    %791 = vmatprep.subr.bf16.mxu0 0
    %792 = vmatpush1.bf16.msra.mxu0 0
    %793 = vmatprep.subr.bf16.mxu0 0
    %794 = vmatpush1.bf16.msra.mxu0 0
    %795 = vmatprep.subr.bf16.mxu0 0
    %796 = vmatpush1.bf16.msra.mxu0 0
    %797 = vmatprep.subr.bf16.mxu0 0
    %798 = vmatpush1.bf16.msra.mxu0 0
    %799 = vmatprep.subr.bf16.mxu0 0
    %800 = vmatpush1.bf16.msra.mxu0 0
    %801 = vmatprep.subr.bf16.mxu0 0
    %802 = vmatpush1.bf16.msra.mxu0 0
    %803 = vmatprep.subr.bf16.mxu0 0
    %804 = vmatpush1.bf16.msra.mxu0 0
    %805 = vmatprep.subr.bf16.mxu0 0
    %806 = vmatpush1.bf16.msra.mxu0 0
    %807 = vmatprep.mubr.bf16.mxu0 0
    %808 = vmatmul.mubr.bf16.gmra.mrb[0].mxu0 %v559
    %v809 = vpop.f32.mrb[0].mxu0
    %v810 = vadd.f32 0.0, %v809
    %v811 = vpop.f32.mrb[0].mxu0
    %v812 = vpop.f32.mrb[0].mxu0
    %v813 = vadd.f32 0.0, %v812
    %v814 = vpop.f32.mrb[0].mxu0
    %815 = vmatprep.mubr.bf16.mxu0 0
    %816 = vmatmul.mubr.bf16.gmra.mrb[0].mxu0 %v560
    %v817 = vpop.f32.mrb[0].mxu0
    %v818 = vadd.f32 0.0, %v817
    %v819 = vpop.f32.mrb[0].mxu0
    %v820 = vpop.f32.mrb[0].mxu0
    %v821 = vadd.f32 0.0, %v820
    %v822 = vpop.f32.mrb[0].mxu0
    %823 = vdwg.mxu0
    %v824 = vrot.slane %v757, 7
    %v825 = vrot.slane %v761, 7
    %v826 = vrot.slane %v767, 7
    %v827 = vrot.slane %v771, 7
    %v828 = vsel %vm510, %v826, %v827
    %v829 = vsel %vm510, %v825, %v826
    %v830 = vsel %vm510, %v824, %v825
    %v831 = vsel %vm510, %v827, %v824
    %v832 = vmul.f32 %v831, %v230
    %v833 = vmul.f32 %v830, %v231
    %v834 = vmul.f32 %v829, %v230
    %v835 = vmul.f32 %v828, %v231
    %v836 = vadd.f32 %v759, %v832
    %v837 = vadd.f32 %v763, %v833
    %v838 = vadd.f32 %v769, %v834
    %v839 = vadd.f32 %v773, %v835
    %v840 = vrot.slane %v810, 1
    %v841 = vrot.slane %v813, 1
    %v842 = vrot.slane %v818, 1
    %v843 = vrot.slane %v821, 1
    %v844 = vsel %vm527, %v842, %v843
    %v845 = vsel %vm527, %v841, %v842
    %v846 = vsel %vm527, %v840, %v841
    %v847 = vsel %vm527, %v843, %v840
    %v848 = vmul.f32 %v846, %v240
    %v849 = vmul.f32 %v845, %v241
    %v850 = vmul.f32 %v844, %v240
    %v851 = vmul.f32 %v847, %v241
    %v852 = vadd.f32 %v836, %v848
    %v853 = vadd.f32 %v837, %v849
    %v854 = vadd.f32 %v838, %v850
    %v855 = vadd.f32 %v839, %v851
    %s856 = scalar_lea.vmem %s4, 1
    %v857 = vld [vmem:[%s856] sm:$0x1]
    %v859 = vlaneseq
    %v860 = vshrl.u32 %v859, 7
    %v861 = vsub.s32 0, %v860
    %v862 = vrot.slane %v857, %v861
    %v864 = vadd.f32 %v852, %v862
    %v865 = vadd.f32 %v853, %v862
    %v866 = vadd.f32 %v854, %v862
    %v867 = vadd.f32 %v855, %v862
    %v868 = vmax.f32 %v864, 0.0
    %v869 = vmax.f32 %v865, 0.0
    %v870 = vmax.f32 %v866, 0.0
    %v871 = vmax.f32 %v867, 0.0
    %v872 = vadd.f32 %v555, %v868
    %v873 = vadd.f32 %v556, %v869
    %v874 = vadd.f32 %v557, %v870
    %v875 = vadd.f32 %v558, %v871
    %v876 = vpack.c.bf16 %v873, %v872
    %v877 = vpack.c.bf16 %v875, %v874
    %s878 = scalar_lea.vmem [#allocation7], 384
    %v879 = vld [vmem:[%s878] sm:$0xff]
    %v880 = vld [vmem:[%s878 + $0x8] sm:$0xf]
    %v881 = vld [vmem:[%s878 + $0xc] sm:$0xff]
    %v882 = vld [vmem:[%s878 + $0x14] sm:$0xf]
    %v883 = vld [vmem:[%s878 + $0x18] sm:$0xff]
    %v884 = vld [vmem:[%s878 + $0x20] sm:$0xf]
    %v885 = vld [vmem:[%s878 + $0x24] sm:$0xff]
    %v886 = vld [vmem:[%s878 + $0x2c] sm:$0xf]
    %v887 = vld [vmem:[%s878 + $0x30] sm:$0xff]
    %v888 = vld [vmem:[%s878 + $0x38] sm:$0xf]
    %v889 = vld [vmem:[%s878 + $0x3c] sm:$0xff]
    %v890 = vld [vmem:[%s878 + $0x44] sm:$0xf]
    %v891 = vld [vmem:[%s878 + $0x48] sm:$0xff]
    %v892 = vld [vmem:[%s878 + $0x50] sm:$0xf]
    %v893 = vld [vmem:[%s878 + $0x54] sm:$0xff]
    %v894 = vld [vmem:[%s878 + $0x5c] sm:$0xf]
    %v895 = vld [vmem:[%s878 + $0x60] sm:$0xff]
    %v896 = vld [vmem:[%s878 + $0x68] sm:$0xf]
    %v897 = vld [vmem:[%s878 + $0x6c] sm:$0xff]
    %v898 = vld [vmem:[%s878 + $0x74] sm:$0xf]
    %v899 = vld [vmem:[%s878 + $0x78] sm:$0xff]
    %v900 = vld [vmem:[%s878 + $0x80] sm:$0xf]
    %v901 = vld [vmem:[%s878 + $0x84] sm:$0xff]
    %v902 = vld [vmem:[%s878 + $0x8c] sm:$0xf]
    %v903 = vld [vmem:[%s878 + $0x90] sm:$0xff]
    %v904 = vld [vmem:[%s878 + $0x98] sm:$0xf]
    %v905 = vld [vmem:[%s878 + $0x9c] sm:$0xff]
    %v906 = vld [vmem:[%s878 + $0xa4] sm:$0xf]
    %v907 = vld [vmem:[%s878 + $0xa8] sm:$0xff]
    %v908 = vld [vmem:[%s878 + $0xb0] sm:$0xf]
    %v909 = vld [vmem:[%s878 + $0xb4] sm:$0xff]
    %v910 = vld [vmem:[%s878 + $0xbc] sm:$0xf]
    %v943 = vunpack.c.l.b16 %v879
    %v944 = vunpack.c.h.b16 %v879
    %v945 = vunpack.c.l.b16 %v880
    %v946 = vunpack.c.l.b16 %v881
    %v947 = vunpack.c.h.b16 %v881
    %v948 = vunpack.c.l.b16 %v882
    %v949 = vunpack.c.l.b16 %v883
    %v950 = vunpack.c.h.b16 %v883
    %v951 = vunpack.c.l.b16 %v884
    %v952 = vunpack.c.l.b16 %v885
    %v953 = vunpack.c.h.b16 %v885
    %v954 = vunpack.c.l.b16 %v886
    %v955 = vunpack.c.l.b16 %v887
    %v956 = vunpack.c.h.b16 %v887
    %v957 = vunpack.c.l.b16 %v888
    %v958 = vunpack.c.l.b16 %v889
    %v959 = vunpack.c.h.b16 %v889
    %v960 = vunpack.c.l.b16 %v890
    %v961 = vunpack.c.l.b16 %v891
    %v962 = vunpack.c.h.b16 %v891
    %v963 = vunpack.c.l.b16 %v892
    %v964 = vunpack.c.l.b16 %v893
    %v965 = vunpack.c.h.b16 %v893
    %v966 = vunpack.c.l.b16 %v894
    %v967 = vunpack.c.l.b16 %v895
    %v968 = vunpack.c.h.b16 %v895
    %v969 = vunpack.c.l.b16 %v896
    %v970 = vunpack.c.l.b16 %v897
    %v971 = vunpack.c.h.b16 %v897
    %v972 = vunpack.c.l.b16 %v898
    %v973 = vunpack.c.l.b16 %v899
    %v974 = vunpack.c.h.b16 %v899
    %v975 = vunpack.c.l.b16 %v900
    %v976 = vunpack.c.l.b16 %v901
    %v977 = vunpack.c.h.b16 %v901
    %v978 = vunpack.c.l.b16 %v902
    %v979 = vunpack.c.l.b16 %v903
    %v980 = vunpack.c.h.b16 %v903
    %v981 = vunpack.c.l.b16 %v904
    %v982 = vunpack.c.l.b16 %v905
    %v983 = vunpack.c.h.b16 %v905
    %v984 = vunpack.c.l.b16 %v906
    %v985 = vunpack.c.l.b16 %v907
    %v986 = vunpack.c.h.b16 %v907
    %v987 = vunpack.c.l.b16 %v908
    %v988 = vunpack.c.l.b16 %v909
    %v989 = vunpack.c.h.b16 %v909
    %v990 = vunpack.c.l.b16 %v910
    %v991 = vpack.c.b16 %v946, %v943
    %v992 = vpack.c.b16 %v947, %v944
    %v993 = vpack.c.b16 %v948, %v945
    %v994 = vpack.c.b16 %v952, %v949
    %v995 = vpack.c.b16 %v953, %v950
    %v996 = vpack.c.b16 %v954, %v951
    %v997 = vpack.c.b16 %v958, %v955
    %v998 = vpack.c.b16 %v959, %v956
    %v999 = vpack.c.b16 %v960, %v957
    %v1000 = vpack.c.b16 %v964, %v961
    %v1001 = vpack.c.b16 %v965, %v962
    %v1002 = vpack.c.b16 %v966, %v963
    %v1003 = vpack.c.b16 %v970, %v967
    %v1004 = vpack.c.b16 %v971, %v968
    %v1005 = vpack.c.b16 %v972, %v969
    %v1006 = vpack.c.b16 %v976, %v973
    %v1007 = vpack.c.b16 %v977, %v974
    %v1008 = vpack.c.b16 %v978, %v975
    %v1009 = vpack.c.b16 %v982, %v979
    %v1010 = vpack.c.b16 %v983, %v980
    %v1011 = vpack.c.b16 %v984, %v981
    %v1012 = vpack.c.b16 %v988, %v985
    %v1013 = vpack.c.b16 %v989, %v986
    %v1014 = vpack.c.b16 %v990, %v987
    %1039 = vmatprep.subr.bf16.mxu0 %v992
    %1040 = vmatpush1.bf16.msra.mxu0 %v991
    %1041 = vmatprep.subr.bf16.mxu0 %v995
    %1042 = vmatpush1.bf16.msra.mxu0 %v994
    %1043 = vmatprep.subr.bf16.mxu0 %v998
    %1044 = vmatpush1.bf16.msra.mxu0 %v997
    %1045 = vmatprep.subr.bf16.mxu0 %v1001
    %1046 = vmatpush1.bf16.msra.mxu0 %v1000
    %1047 = vmatprep.subr.bf16.mxu0 %v1004
    %1048 = vmatpush1.bf16.msra.mxu0 %v1003
    %1049 = vmatprep.subr.bf16.mxu0 %v1007
    %1050 = vmatpush1.bf16.msra.mxu0 %v1006
    %1051 = vmatprep.subr.bf16.mxu0 %v1010
    %1052 = vmatpush1.bf16.msra.mxu0 %v1009
    %1053 = vmatprep.subr.bf16.mxu0 %v1013
    %1054 = vmatpush1.bf16.msra.mxu0 %v1012
    %1055 = vmatprep.subr.bf16.mxu0 0
    %1056 = vmatpush1.bf16.msra.mxu0 0
    %1057 = vmatprep.subr.bf16.mxu0 0
    %1058 = vmatpush1.bf16.msra.mxu0 0
    %1059 = vmatprep.subr.bf16.mxu0 0
    %1060 = vmatpush1.bf16.msra.mxu0 0
    %1061 = vmatprep.subr.bf16.mxu0 0
    %1062 = vmatpush1.bf16.msra.mxu0 0
    %1063 = vmatprep.subr.bf16.mxu0 0
    %1064 = vmatpush1.bf16.msra.mxu0 0
    %1065 = vmatprep.subr.bf16.mxu0 0
    %1066 = vmatpush1.bf16.msra.mxu0 0
    %1067 = vmatprep.subr.bf16.mxu0 0
    %1068 = vmatpush1.bf16.msra.mxu0 0
    %1069 = vmatprep.subr.bf16.mxu0 0
    %1070 = vmatpush1.bf16.msra.mxu0 0
    %1071 = vmatprep.mubr.bf16.mxu0 0
    %1072 = vmatmul.mubr.bf16.gmra.mrb[0].mxu0 %v876
    %v1073 = vpop.f32.mrb[0].mxu0
    %v1074 = vadd.f32 0.0, %v1073
    %v1075 = vpop.f32.mrb[0].mxu0
    %v1076 = vadd.f32 0.0, %v1075
    %v1077 = vpop.f32.mrb[0].mxu0
    %v1078 = vadd.f32 0.0, %v1077
    %v1079 = vpop.f32.mrb[0].mxu0
    %v1080 = vadd.f32 0.0, %v1079
    %1081 = vmatprep.mubr.bf16.mxu0 0
    %1082 = vmatmul.mubr.bf16.gmra.mrb[0].mxu0 %v877
    %v1083 = vpop.f32.mrb[0].mxu0
    %v1084 = vadd.f32 0.0, %v1083
    %v1085 = vpop.f32.mrb[0].mxu0
    %v1086 = vadd.f32 0.0, %v1085
    %v1087 = vpop.f32.mrb[0].mxu0
    %v1088 = vadd.f32 0.0, %v1087
    %v1089 = vpop.f32.mrb[0].mxu0
    %v1090 = vadd.f32 0.0, %v1089
    %1091 = vdwg.mxu0
    %1092 = vmatprep.subr.bf16.mxu0 0
    %1093 = vmatpush1.bf16.msra.mxu0 %v993
    %1094 = vmatprep.subr.bf16.mxu0 0
    %1095 = vmatpush1.bf16.msra.mxu0 %v996
    %1096 = vmatprep.subr.bf16.mxu0 0
    %1097 = vmatpush1.bf16.msra.mxu0 %v999
    %1098 = vmatprep.subr.bf16.mxu0 0
    %1099 = vmatpush1.bf16.msra.mxu0 %v1002
    %1100 = vmatprep.subr.bf16.mxu0 0
    %1101 = vmatpush1.bf16.msra.mxu0 %v1005
    %1102 = vmatprep.subr.bf16.mxu0 0
    %1103 = vmatpush1.bf16.msra.mxu0 %v1008
    %1104 = vmatprep.subr.bf16.mxu0 0
    %1105 = vmatpush1.bf16.msra.mxu0 %v1011
    %1106 = vmatprep.subr.bf16.mxu0 0
    %1107 = vmatpush1.bf16.msra.mxu0 %v1014
    %1108 = vmatprep.subr.bf16.mxu0 0
    %1109 = vmatpush1.bf16.msra.mxu0 0
    %1110 = vmatprep.subr.bf16.mxu0 0
    %1111 = vmatpush1.bf16.msra.mxu0 0
    %1112 = vmatprep.subr.bf16.mxu0 0
    %1113 = vmatpush1.bf16.msra.mxu0 0
    %1114 = vmatprep.subr.bf16.mxu0 0
    %1115 = vmatpush1.bf16.msra.mxu0 0
    %1116 = vmatprep.subr.bf16.mxu0 0
    %1117 = vmatpush1.bf16.msra.mxu0 0
    %1118 = vmatprep.subr.bf16.mxu0 0
    %1119 = vmatpush1.bf16.msra.mxu0 0
    %1120 = vmatprep.subr.bf16.mxu0 0
    %1121 = vmatpush1.bf16.msra.mxu0 0
    %1122 = vmatprep.subr.bf16.mxu0 0
    %1123 = vmatpush1.bf16.msra.mxu0 0
    %1124 = vmatprep.mubr.bf16.mxu0 0
    %1125 = vmatmul.mubr.bf16.gmra.mrb[0].mxu0 %v876
    %v1126 = vpop.f32.mrb[0].mxu0
    %v1127 = vadd.f32 0.0, %v1126
    %v1128 = vpop.f32.mrb[0].mxu0
    %v1129 = vpop.f32.mrb[0].mxu0
    %v1130 = vadd.f32 0.0, %v1129
    %v1131 = vpop.f32.mrb[0].mxu0
    %1132 = vmatprep.mubr.bf16.mxu0 0
    %1133 = vmatmul.mubr.bf16.gmra.mrb[0].mxu0 %v877
    %v1134 = vpop.f32.mrb[0].mxu0
    %v1135 = vadd.f32 0.0, %v1134
    %v1136 = vpop.f32.mrb[0].mxu0
    %v1137 = vpop.f32.mrb[0].mxu0
    %v1138 = vadd.f32 0.0, %v1137
    %v1139 = vpop.f32.mrb[0].mxu0
    %1140 = vdwg.mxu0
    %v1141 = vrot.slane %v1074, 7
    %v1142 = vrot.slane %v1078, 7
    %v1143 = vrot.slane %v1084, 7
    %v1144 = vrot.slane %v1088, 7
    %v1145 = vsel %vm510, %v1143, %v1144
    %v1146 = vsel %vm510, %v1142, %v1143
    %v1147 = vsel %vm510, %v1141, %v1142
    %v1148 = vsel %vm510, %v1144, %v1141
    %v1149 = vmul.f32 %v1148, %v230
    %v1150 = vmul.f32 %v1147, %v231
    %v1151 = vmul.f32 %v1146, %v230
    %v1152 = vmul.f32 %v1145, %v231
    %v1153 = vadd.f32 %v1076, %v1149
    %v1154 = vadd.f32 %v1080, %v1150
    %v1155 = vadd.f32 %v1086, %v1151
    %v1156 = vadd.f32 %v1090, %v1152
    %v1157 = vrot.slane %v1127, 1
    %v1158 = vrot.slane %v1130, 1
    %v1159 = vrot.slane %v1135, 1
    %v1160 = vrot.slane %v1138, 1
    %v1161 = vsel %vm527, %v1159, %v1160
    %v1162 = vsel %vm527, %v1158, %v1159
    %v1163 = vsel %vm527, %v1157, %v1158
    %v1164 = vsel %vm527, %v1160, %v1157
    %v1165 = vmul.f32 %v1163, %v240
    %v1166 = vmul.f32 %v1162, %v241
    %v1167 = vmul.f32 %v1161, %v240
    %v1168 = vmul.f32 %v1164, %v241
    %v1169 = vadd.f32 %v1153, %v1165
    %v1170 = vadd.f32 %v1154, %v1166
    %v1171 = vadd.f32 %v1155, %v1167
    %v1172 = vadd.f32 %v1156, %v1168
    %s1173 = scalar_lea.vmem %s4, 2
    %v1174 = vld [vmem:[%s1173] sm:$0x1]
    %v1176 = vlaneseq
    %v1177 = vshrl.u32 %v1176, 7
    %v1178 = vsub.s32 0, %v1177
    %v1179 = vrot.slane %v1174, %v1178
    %v1181 = vadd.f32 %v1169, %v1179
    %v1182 = vadd.f32 %v1170, %v1179
    %v1183 = vadd.f32 %v1171, %v1179
    %v1184 = vadd.f32 %v1172, %v1179
    %v1185 = vmax.f32 %v1181, 0.0
    %v1186 = vmax.f32 %v1182, 0.0
    %v1187 = vmax.f32 %v1183, 0.0
    %v1188 = vmax.f32 %v1184, 0.0
    %v1189 = vadd.f32 %v872, %v1185
    %v1190 = vadd.f32 %v873, %v1186
    %v1191 = vadd.f32 %v874, %v1187
    %v1192 = vadd.f32 %v875, %v1188
    %v1193 = vpack.c.bf16 %v1190, %v1189
    %v1194 = vpack.c.bf16 %v1192, %v1191
    %v1195 = vld [vmem:[#allocation8] sm:$0xf]
    %v1196 = vld [vmem:[#allocation8 + $0x4] sm:$0xf]
    %v1197 = vld [vmem:[#allocation8 + $0x8] sm:$0xf]
    %v1198 = vld [vmem:[#allocation8 + $0xc] sm:$0xf]
    %v1199 = vld [vmem:[#allocation8 + $0x10] sm:$0xf]
    %v1200 = vld [vmem:[#allocation8 + $0x14] sm:$0xf]
    %v1201 = vld [vmem:[#allocation8 + $0x18] sm:$0xf]
    %v1202 = vld [vmem:[#allocation8 + $0x1c] sm:$0xf]
    %v1203 = vld [vmem:[#allocation8 + $0x20] sm:$0xf]
    %v1204 = vld [vmem:[#allocation8 + $0x24] sm:$0xf]
    %v1205 = vld [vmem:[#allocation8 + $0x28] sm:$0xf]
    %v1206 = vld [vmem:[#allocation8 + $0x2c] sm:$0xf]
    %v1207 = vld [vmem:[#allocation8 + $0x30] sm:$0xf]
    %v1208 = vld [vmem:[#allocation8 + $0x34] sm:$0xf]
    %v1209 = vld [vmem:[#allocation8 + $0x38] sm:$0xf]
    %v1210 = vld [vmem:[#allocation8 + $0x3c] sm:$0xf]
    %v1211 = vld [vmem:[%s6] sm:$0x1]
    %v1213 = vlaneseq
    %v1214 = vshrl.u32 %v1213, 7
    %v1215 = vsub.s32 0, %v1214
    %v1216 = vrot.slane %v1211, %v1215
    %v1234 = vunpack.c.l.b16 %v1195
    %v1235 = vunpack.c.l.b16 %v1196
    %v1236 = vunpack.c.l.b16 %v1197
    %v1237 = vunpack.c.l.b16 %v1198
    %v1238 = vunpack.c.l.b16 %v1199
    %v1239 = vunpack.c.l.b16 %v1200
    %v1240 = vunpack.c.l.b16 %v1201
    %v1241 = vunpack.c.l.b16 %v1202
    %v1242 = vunpack.c.l.b16 %v1203
    %v1243 = vunpack.c.l.b16 %v1204
    %v1244 = vunpack.c.l.b16 %v1205
    %v1245 = vunpack.c.l.b16 %v1206
    %v1246 = vunpack.c.l.b16 %v1207
    %v1247 = vunpack.c.l.b16 %v1208
    %v1248 = vunpack.c.l.b16 %v1209
    %v1249 = vunpack.c.l.b16 %v1210
    %v1250 = vpack.c.b16 %v1235, %v1234
    %v1251 = vpack.c.b16 %v1237, %v1236
    %v1252 = vpack.c.b16 %v1239, %v1238
    %v1253 = vpack.c.b16 %v1241, %v1240
    %v1254 = vpack.c.b16 %v1243, %v1242
    %v1255 = vpack.c.b16 %v1245, %v1244
    %v1256 = vpack.c.b16 %v1247, %v1246
    %v1257 = vpack.c.b16 %v1249, %v1248
    %1266 = vmatprep.subr.bf16.mxu0 0
    %1267 = vmatpush1.bf16.msra.mxu0 %v1250
    %1268 = vmatprep.subr.bf16.mxu0 0
    %1269 = vmatpush1.bf16.msra.mxu0 %v1251
    %1270 = vmatprep.subr.bf16.mxu0 0
    %1271 = vmatpush1.bf16.msra.mxu0 %v1252
    %1272 = vmatprep.subr.bf16.mxu0 0
    %1273 = vmatpush1.bf16.msra.mxu0 %v1253
    %1274 = vmatprep.subr.bf16.mxu0 0
    %1275 = vmatpush1.bf16.msra.mxu0 %v1254
    %1276 = vmatprep.subr.bf16.mxu0 0
    %1277 = vmatpush1.bf16.msra.mxu0 %v1255
    %1278 = vmatprep.subr.bf16.mxu0 0
    %1279 = vmatpush1.bf16.msra.mxu0 %v1256
    %1280 = vmatprep.subr.bf16.mxu0 0
    %1281 = vmatpush1.bf16.msra.mxu0 %v1257
    %1282 = vmatprep.subr.bf16.mxu0 0
    %1283 = vmatpush1.bf16.msra.mxu0 0
    %1284 = vmatprep.subr.bf16.mxu0 0
    %1285 = vmatpush1.bf16.msra.mxu0 0
    %1286 = vmatprep.subr.bf16.mxu0 0
    %1287 = vmatpush1.bf16.msra.mxu0 0
    %1288 = vmatprep.subr.bf16.mxu0 0
    %1289 = vmatpush1.bf16.msra.mxu0 0
    %1290 = vmatprep.subr.bf16.mxu0 0
    %1291 = vmatpush1.bf16.msra.mxu0 0
    %1292 = vmatprep.subr.bf16.mxu0 0
    %1293 = vmatpush1.bf16.msra.mxu0 0
    %1294 = vmatprep.subr.bf16.mxu0 0
    %1295 = vmatpush1.bf16.msra.mxu0 0
    %1296 = vmatprep.subr.bf16.mxu0 0
    %1297 = vmatpush1.bf16.msra.mxu0 0
    %1298 = vmatprep.mubr.bf16.mxu0 0
    %1299 = vmatmul.mubr.bf16.gmra.mrb[0].mxu0 %v1193
    %v1300 = vpop.f32.mrb[0].mxu0
    %v1301 = vadd.f32 %v1216, %v1300
    %v1302 = vpop.f32.mrb[0].mxu0
    %v1303 = vpop.f32.mrb[0].mxu0
    %v1304 = vadd.f32 %v1216, %v1303
    %v1305 = vpop.f32.mrb[0].mxu0
    %1306 = vmatprep.mubr.bf16.mxu0 0
    %1307 = vmatmul.mubr.bf16.gmra.mrb[0].mxu0 %v1194
    %v1308 = vpop.f32.mrb[0].mxu0
    %v1309 = vadd.f32 %v1216, %v1308
    %v1310 = vpop.f32.mrb[0].mxu0
    %v1311 = vpop.f32.mrb[0].mxu0
    %v1312 = vadd.f32 %v1216, %v1311
    %v1313 = vpop.f32.mrb[0].mxu0
    %1314 = vdwg.mxu0
    %1315 = vst [vmem:[#allocation10] sm:$0xff] %v1301
    %1316 = vst [vmem:[#allocation10 + $0x8] sm:$0xff] %v1304
    %1317 = vst [vmem:[#allocation10 + $0x10] sm:$0xff] %v1309
    %1318 = vst [vmem:[#allocation10 + $0x18] sm:$0xff] %v1312
    // Predicated region
    $region46: #{tpu_custom_call.1} parent=1 // pred_check
      _
    $region47: #{tpu_custom_call.1} parent=1 // pred_check_branch
      %1320 = sbr.rel (0) target = $region49
    $region48: #{tpu_custom_call.1} parent=1 // pred_region
      %s1322 = ssub.s32 512, 512
      %1323 = vsyncadd [#allocation4], %s1322
      %s1324 = sshll.u32 [#allocation10], 4
      %s1325 = int_to_ptr.vmem [resolvable:$true] %s1324
      %1330 = dma.vmem_to_hbm [thread:$0]  %s1325, 512, %s7, [#allocation4], 128, 128, 8
    $region49: #{tpu_custom_call.1} parent=1 // pred_fallthru
      _
    // Predicated region
    $region50: #{tpu_custom_call.1} parent=1 // pred_check
      _
    $region51: #{tpu_custom_call.1} parent=1 // pred_check_branch
      %1332 = sbr.rel (0) target = $region53
    $region52: #{tpu_custom_call.1} parent=1 // pred_region
      %1333 = dma.done [#allocation4], 512
    $region53: #{tpu_custom_call.1} parent=1 // pred_fallthru
      _
    %1334 = vsyncpa [#allocation3], 1
    %1335 = vsyncpa [#allocation6], 1
    %1336 = vsyncpa [#allocation9], 1
    %1337 = vsyncpa [#allocation4], 1

</llo_original>
